<compile_context>
chip_gen: v5e
topology: v5e:2x2
jax: 0.10.0
libtpu: 0.0.40
codegen_flags: <defaults>
</compile_context>

<pallas_src>
import functools

import jax
import jax.numpy as jnp
from jax.experimental import pallas as pl
from jax.experimental.pallas import tpu as pltpu


def _warp_kernel(wtab_ref, x_ref, t_ref, u_ref, out_ref, *,
                 max_num_trials, w_fail):
    """One batch tile of the WARP forward pass.

    wtab_ref : SMEM (T,)        wtab[t] = rank_weights[T // (t + 1)]
    x_ref    : VMEM (TB, Lp)    scores (padded label columns hold 0)
    t_ref    : VMEM (TB, Lp)    targets; padded rows / columns hold -1
    u_ref    : VMEM (T, TB, Lp) iid U[0,1) per-trial uniforms
    out_ref  : VMEM (1, 1, 1)   partial loss for this batch tile
    """
    T = max_num_trials
    x = x_ref[...]
    tgt = t_ref[...]

    pos_f = (tgt > 0.0).astype(jnp.float32)
    neg_f = (tgt == 0.0).astype(jnp.float32)
    valid_f = (tgt >= 0.0).astype(jnp.float32)   # excludes padding (-1)
    lab1_f = (tgt == 1.0).astype(jnp.float32)    # positions where L is set

    # sum_k (1 - pos*x + neg*x), restricted to valid (non-padded) labels.
    row_term = jnp.sum(valid_f - pos_f * x + neg_f * x, axis=1, keepdims=True)

    # Probability that one uniformly sampled negative label beats x[i, j]
    # (margin >= 0).  Single O(TB * L^2) pass, done once, not per trial.
    ge = x[:, None, :] >= x[:, :, None]                        # ge[i, j, k]
    cnt_ge = jnp.sum(jnp.where(ge, neg_f[:, None, :], 0.0), axis=-1)
    num_neg = jnp.sum(neg_f, axis=1, keepdims=True)
    # TODO(synk): rows with zero negative labels make the reference loop
    # forever (undefined); here p = 0 so they simply never succeed.
    p = cnt_ge / jnp.maximum(num_neg, 1.0)                     # (TB, Lp)

    # T Bernoulli(p) trials; record the rank weight of the first success.
    # fori_loop keeps only (TB, Lp) temporaries live per iteration.
    def trial(t, carry):
        done, l_mat = carry                       # f32 0/1 mask, f32 weights
        succ = (u_ref[t] < p).astype(jnp.float32)
        newly = succ * (1.0 - done)
        w_t = wtab_ref[t]                         # rank_weights[T // (t + 1)]
        l_mat = jnp.where(newly > 0.5, w_t, l_mat)
        return jnp.maximum(done, succ), l_mat

    done0 = jnp.zeros(x.shape, dtype=jnp.float32)
    l0 = jnp.full(x.shape, w_fail, dtype=jnp.float32)  # "never succeeded"
    _, l_mat = jax.lax.fori_loop(0, T, trial, (done0, l0))

    l_mat = l_mat * lab1_f                        # only where target == 1
    out_ref[...] = jnp.reshape(jnp.sum(l_mat * row_term), (1, 1, 1))


def warp_loss(inputs, targets, max_num_trials=None, *, key=None, tile_b=8):
    """WARP loss forward.  inputs/targets: (B, L) float.  Returns scalar f32."""
    inputs = jnp.asarray(inputs, jnp.float32)
    targets = jnp.asarray(targets, jnp.float32)
    B, L = inputs.shape
    if max_num_trials is None:
        max_num_trials = L - 1
    T = int(max_num_trials)
    assert T >= 1, "max_num_trials must be >= 1"
    if key is None:
        key = jax.random.PRNGKey(0)

    # rank_weights exactly as in the reference.
    rank_weights = [1.0]
    for i in range(1, L):
        rank_weights.append(rank_weights[i - 1] + (1.0 / i + 1.0))
    # First success at trial t (1-indexed)  ->  weight rank_weights[T // t].
    wtab = jnp.asarray([rank_weights[T // (t + 1)] for t in range(T)],
                       dtype=jnp.float32)
    w_fail = float(rank_weights[T // T])          # no success within T trials

    # Lane-dense padding: labels -> multiple of 128, batch -> multiple of tile.
    tile_b = max(8, (int(tile_b) // 8) * 8)
    L_pad = pl.cdiv(L, 128) * 128
    B_pad = pl.cdiv(B, tile_b) * tile_b
    n_tiles = B_pad // tile_b

    x_p = jnp.zeros((B_pad, L_pad), jnp.float32).at[:B, :L].set(inputs)
    # Padded rows/columns get target = -1: neither positive nor negative, and
    # excluded from the per-row "1" term and from the L matrix.
    t_p = jnp.full((B_pad, L_pad), -1.0, jnp.float32).at[:B, :L].set(targets)

    # Host-side uniforms: one (B, L) draw per trial (Bernoulli simulation of
    # uniform negative sampling).  NOTE: for very large T*L the trial axis
    # could be chunked with an extra grid axis; not needed at these sizes.
    u = jax.random.uniform(key, (T, B_pad, L_pad), dtype=jnp.float32)

    kernel = functools.partial(_warp_kernel, max_num_trials=T, w_fail=w_fail)
    partials = pl.pallas_call(
        kernel,
        out_shape=jax.ShapeDtypeStruct((n_tiles, 1, 1), jnp.float32),
        grid=(n_tiles,),
        in_specs=[
            pl.BlockSpec(memory_space=pltpu.MemorySpace.SMEM),      # wtab (T,)
            pl.BlockSpec((tile_b, L_pad), lambda b: (b, 0)),        # scores
            pl.BlockSpec((tile_b, L_pad), lambda b: (b, 0)),        # targets
            pl.BlockSpec((T, tile_b, L_pad), lambda b: (0, b, 0)),  # uniforms
        ],
        out_specs=pl.BlockSpec((1, 1, 1), lambda b: (b, 0, 0)),
        compiler_params=pltpu.CompilerParams(
            dimension_semantics=("parallel",)),   # megacore sharding on v7x
    )(wtab, x_p, t_p, u)
    return jnp.sum(partials)


if __name__ == "__main__":
    key = jax.random.PRNGKey(0)
    k_x, k_t, k_u = jax.random.split(key, 3)

    B, L = 4, 8  # batch = 4, multi-label size = 8
    x = jax.random.normal(k_x, (B, L), dtype=jnp.float32)
    tgt = (jax.random.uniform(k_t, (B, L)) > 0.5).astype(jnp.float32)
    # guarantee each row has at least one positive and one negative label
    tgt = tgt.at[:, 0].set(1.0)
    tgt = tgt.at[:, L - 1].set(0.0)

    loss = warp_loss(x, tgt, key=k_u)
    loss = jax.block_until_ready(loss)
    assert bool(jnp.isfinite(loss)), "non-finite loss"
    print("KERNEL_OK")
</pallas_src>

<mosaic_0001>
module attributes {stable_mosaic.version = 11 : i64} {
  func.func @_warp_kernel(%arg0: i32, %arg1: memref<7xf32, #tpu.memory_space<smem>>, %arg2: memref<8x128xf32, #tpu.memory_space<vmem>>, %arg3: memref<8x128xf32, #tpu.memory_space<vmem>>, %arg4: memref<7x8x128xf32, #tpu.memory_space<vmem>>, %arg5: memref<1x1x1xf32, #tpu.memory_space<vmem>>) attributes {dimension_semantics = [#tpu.dimension_semantics<parallel>], iteration_bounds = array<i64: 1>, scalar_prefetch = 0 : i64, scratch_operands = 0 : i64, tpu.core_type = #tpu.core_type<tc>, window_params = [{transform_indices = @transform_0, window_bounds = array<i64: 7>}, {transform_indices = @transform_1, window_bounds = array<i64: 8, 128>}, {transform_indices = @transform_2, window_bounds = array<i64: 8, 128>}, {transform_indices = @transform_3, window_bounds = array<i64: 7, 8, 128>}, {transform_indices = @transform_4, window_bounds = array<i64: 1, 1, 1>}]} {
    %c0 = arith.constant 0 : index
    %c0_0 = arith.constant 0 : index
    %0 = vector.load %arg2[%c0, %c0_0] : memref<8x128xf32, #tpu.memory_space<vmem>>, vector<8x128xf32>
    %c0_1 = arith.constant 0 : index
    %c0_2 = arith.constant 0 : index
    %1 = vector.load %arg3[%c0_1, %c0_2] : memref<8x128xf32, #tpu.memory_space<vmem>>, vector<8x128xf32>
    %cst = arith.constant 0.000000e+00 : f32
    %2 = vector.broadcast %cst : f32 to vector<8x128xf32>
    %3 = arith.cmpf ogt, %1, %2 : vector<8x128xf32>
    %4 = arith.extui %3 : vector<8x128xi1> to vector<8x128xi32>
    %5 = arith.sitofp %4 : vector<8x128xi32> to vector<8x128xf32>
    %cst_3 = arith.constant 0.000000e+00 : f32
    %6 = vector.broadcast %cst_3 : f32 to vector<8x128xf32>
    %7 = arith.cmpf oeq, %1, %6 : vector<8x128xf32>
    %8 = arith.extui %7 : vector<8x128xi1> to vector<8x128xi32>
    %9 = arith.sitofp %8 : vector<8x128xi32> to vector<8x128xf32>
    %cst_4 = arith.constant 0.000000e+00 : f32
    %10 = vector.broadcast %cst_4 : f32 to vector<8x128xf32>
    %11 = arith.cmpf oge, %1, %10 : vector<8x128xf32>
    %12 = arith.extui %11 : vector<8x128xi1> to vector<8x128xi32>
    %13 = arith.sitofp %12 : vector<8x128xi32> to vector<8x128xf32>
    %cst_5 = arith.constant 1.000000e+00 : f32
    %14 = vector.broadcast %cst_5 : f32 to vector<8x128xf32>
    %15 = arith.cmpf oeq, %1, %14 : vector<8x128xf32>
    %16 = arith.extui %15 : vector<8x128xi1> to vector<8x128xi32>
    %17 = arith.sitofp %16 : vector<8x128xi32> to vector<8x128xf32>
    %18 = arith.mulf %5, %0 : vector<8x128xf32>
    %19 = arith.subf %13, %18 : vector<8x128xf32>
    %20 = arith.mulf %9, %0 : vector<8x128xf32>
    %21 = arith.addf %19, %20 : vector<8x128xf32>
    %cst_6 = arith.constant dense<0.000000e+00> : vector<8xf32>
    %22 = vector.multi_reduction <add>, %21, %cst_6 [1] : vector<8x128xf32> to vector<8xf32>
    %23 = vector.shape_cast %22 : vector<8xf32> to vector<8x1xf32>
    %24 = vector.shape_cast %0 : vector<8x128xf32> to vector<8x1x128xf32>
    %25 = vector.shape_cast %0 : vector<8x128xf32> to vector<8x128x1xf32>
    %26 = vector.broadcast %24 : vector<8x1x128xf32> to vector<8x128x128xf32>
    %27 = vector.broadcast %25 : vector<8x128x1xf32> to vector<8x128x128xf32>
    %28 = arith.cmpf oge, %26, %27 : vector<8x128x128xf32>
    %29 = vector.shape_cast %9 : vector<8x128xf32> to vector<8x1x128xf32>
    %cst_7 = arith.constant 0.000000e+00 : f32
    %30 = vector.shape_cast %29 : vector<8x1x128xf32> to vector<8x1x128xf32>
    %31 = vector.broadcast %30 : vector<8x1x128xf32> to vector<8x128x128xf32>
    %32 = vector.broadcast %cst_7 : f32 to vector<8x128x128xf32>
    %33 = arith.select %28, %31, %32 : vector<8x128x128xi1>, vector<8x128x128xf32>
    %cst_8 = arith.constant dense<0.000000e+00> : vector<8x128xf32>
    %34 = vector.multi_reduction <add>, %33, %cst_8 [2] : vector<8x128x128xf32> to vector<8x128xf32>
    %cst_9 = arith.constant dense<0.000000e+00> : vector<8xf32>
    %35 = vector.multi_reduction <add>, %9, %cst_9 [1] : vector<8x128xf32> to vector<8xf32>
    %36 = vector.shape_cast %35 : vector<8xf32> to vector<8x1xf32>
    %cst_10 = arith.constant 1.000000e+00 : f32
    %37 = vector.broadcast %cst_10 : f32 to vector<8x1xf32>
    %38 = arith.maximumf %36, %37 : vector<8x1xf32>
    %39 = vector.broadcast %38 : vector<8x1xf32> to vector<8x128xf32>
    %40 = arith.divf %34, %39 : vector<8x128xf32>
    %cst_11 = arith.constant 0.000000e+00 : f32
    %41 = vector.broadcast %cst_11 : f32 to vector<8x128xf32>
    %cst_12 = arith.constant 3.000000e+00 : f32
    %42 = vector.broadcast %cst_12 : f32 to vector<8x128xf32>
    %c0_i32 = arith.constant 0 : i32
    %c7_i32 = arith.constant 7 : i32
    %43 = arith.addi %c0_i32, %c7_i32 : i32
    %c1_i32 = arith.constant 1 : i32
    %44:2 = scf.for %arg6 = %c0_i32 to %43 step %c1_i32 iter_args(%arg7 = %41, %arg8 = %42) -> (vector<8x128xf32>, vector<8x128xf32>)  : i32 {
      %54 = arith.index_cast %arg6 : i32 to index
      %c0_18 = arith.constant 0 : index
      %c0_19 = arith.constant 0 : index
      %55 = vector.load %arg4[%54, %c0_18, %c0_19] : memref<7x8x128xf32, #tpu.memory_space<vmem>>, vector<1x8x128xf32>
      %56 = vector.shape_cast %55 : vector<1x8x128xf32> to vector<8x128xf32>
      %57 = arith.cmpf olt, %56, %40 : vector<8x128xf32>
      %58 = arith.extui %57 : vector<8x128xi1> to vector<8x128xi32>
      %59 = arith.sitofp %58 : vector<8x128xi32> to vector<8x128xf32>
      %cst_20 = arith.constant 1.000000e+00 : f32
      %60 = vector.broadcast %cst_20 : f32 to vector<8x128xf32>
      %61 = arith.subf %60, %arg7 : vector<8x128xf32>
      %62 = arith.mulf %59, %61 : vector<8x128xf32>
      %63 = arith.index_cast %arg6 : i32 to index
      %64 = memref.load %arg1[%63] : memref<7xf32, #tpu.memory_space<smem>>
      %cst_21 = arith.constant 5.000000e-01 : f32
      %65 = vector.broadcast %cst_21 : f32 to vector<8x128xf32>
      %66 = arith.cmpf ogt, %62, %65 : vector<8x128xf32>
      %67 = vector.broadcast %64 : f32 to vector<8x128xf32>
      %68 = arith.select %66, %67, %arg8 : vector<8x128xi1>, vector<8x128xf32>
      %69 = arith.maximumf %arg7, %59 : vector<8x128xf32>
      scf.yield %69, %68 : vector<8x128xf32>, vector<8x128xf32>
    }
    %c7_i32_13 = arith.constant 7 : i32
    %45 = arith.mulf %44#1, %17 : vector<8x128xf32>
    %46 = vector.broadcast %23 : vector<8x1xf32> to vector<8x128xf32>
    %47 = arith.mulf %45, %46 : vector<8x128xf32>
    %48 = vector.shape_cast %47 : vector<8x128xf32> to vector<1x8x128xf32>
    %cst_14 = arith.constant dense<0.000000e+00> : vector<1xf32>
    %49 = vector.multi_reduction <add>, %48, %cst_14 [1, 2] : vector<1x8x128xf32> to vector<1xf32>
    %50 = vector.shape_cast %49 : vector<1xf32> to vector<1x1x1xf32>
    %51 = vector.extract %50[0, 0, 0] : f32 from vector<1x1x1xf32>
    %52 = vector.broadcast %51 : f32 to vector<1x1x1xf32>
    %c0_15 = arith.constant 0 : index
    %c0_16 = arith.constant 0 : index
    %c0_17 = arith.constant 0 : index
    %53 = vector.load %arg5[%c0_15, %c0_16, %c0_17] : memref<1x1x1xf32, #tpu.memory_space<vmem>>, vector<1x1x1xf32>
    tpu.vector_store %arg5[%c0_15, %c0_16, %c0_17], %52 {strides = array<i32>} : memref<1x1x1xf32, #tpu.memory_space<vmem>>, vector<1x1x1xf32>,
    return
  }
  func.func @transform_0(%arg0: i32) -> i32 {
    %c0_i32 = arith.constant 0 : i32
    %c0_i32_0 = arith.constant 0 : i32
    return %c0_i32 : i32
  }
  func.func @transform_1(%arg0: i32) -> (i32, i32) {
    %c0_i32 = arith.constant 0 : i32
    %c0_i32_0 = arith.constant 0 : i32
    return %arg0, %c0_i32 : i32, i32
  }
  func.func @transform_2(%arg0: i32) -> (i32, i32) {
    %c0_i32 = arith.constant 0 : i32
    %c0_i32_0 = arith.constant 0 : i32
    return %arg0, %c0_i32 : i32, i32
  }
  func.func @transform_3(%arg0: i32) -> (i32, i32, i32) {
    %c0_i32 = arith.constant 0 : i32
    %c0_i32_0 = arith.constant 0 : i32
    %c0_i32_1 = arith.constant 0 : i32
    return %c0_i32, %arg0, %c0_i32_0 : i32, i32, i32
  }
  func.func @transform_4(%arg0: i32) -> (i32, i32, i32) {
    %c0_i32 = arith.constant 0 : i32
    %c0_i32_0 = arith.constant 0 : i32
    %c0_i32_1 = arith.constant 0 : i32
    return %arg0, %c0_i32, %c0_i32_0 : i32, i32, i32
  }
}

</mosaic_0001>

<llo_original>
// kernel: tpu_custom_call.1
$region0: #{tpu_custom_call.1}
  #allocation0 [shape = 'u32[]', space=smem, size = 0x4, offset = 0x4, fixed_abs, tag = 'smem constant byte address 0x4 - core index']
  #allocation1 [shape = 'u32[72,128]{1,0:T(1,128)}', space=vmem, size = 0x9000, scoped, tag = 'internal scratch']
  %s0 = inlined_call_operand.hbm [shape: f32[7], index: 0, kind: input, shape index: {}]
  %s1 = inlined_call_operand.hbm [shape: f32[8,128], index: 1, kind: input, shape index: {}]
  %s2 = inlined_call_operand.hbm [shape: f32[8,128], index: 2, kind: input, shape index: {}]
  %s3 = inlined_call_operand.hbm [shape: f32[7,8,128], index: 3, kind: input, shape index: {}]
  %s4 = inlined_call_operand.hbm [shape: f32[1,1,1], index: 4, kind: output, shape index: {}]
  %s5 = sld [smem:[#allocation0]]
  $region49: #{tpu_custom_call.1} parent=0
    _
  %s7 = ssub.s32 1, %s5
  %s8 = scalar_select 0, %s7, %s5
  $region1: #{tpu_custom_call.1} parent=0
    #allocation2 [shape = 'u8[512]{0}', space=smem, size = 0x200, scoped, tag = 'input window, operand 0, single buffered']
    #allocation3 [shape = 's32[1]{0}', space=sflag, size = 0x4, scoped, tag = 'scoped memory for tpu_custom_call.1']
    #allocation4 [shape = 's32[1]{0}', space=sflag, size = 0x4, scoped, tag = 'scoped memory for tpu_custom_call.1']
    #allocation5 [shape = 's32[1]{0}', space=sflag, size = 0x4, scoped, tag = 'scoped memory for tpu_custom_call.1']
    #allocation6 [shape = 'u8[4096]{0}', space=vmem, size = 0x1000, scoped, tag = 'input window, operand 1, single buffered']
    #allocation7 [shape = 'u8[4096]{0}', space=vmem, size = 0x1000, scoped, tag = 'input window, operand 2, single buffered']
    #allocation8 [shape = 's32[1]{0}', space=sflag, size = 0x4, scoped, tag = 'scoped memory for tpu_custom_call.1']
    #allocation9 [shape = 'u8[28672]{0}', space=vmem, size = 0x7000, scoped, tag = 'input window, operand 3, single buffered']
    #allocation10 [shape = 'u8[512]{0}', space=vmem, size = 0x400, scoped, tag = 'output window, operand 0, single buffered']
    %9 = vsyncpa [#allocation5], 0
    %10 = vsyncpa [#allocation3], 0
    %11 = vsyncpa [#allocation8], 0
    %12 = vsyncpa [#allocation4], 0
    // Predicated region
    $region2: #{tpu_custom_call.1} parent=1 // pred_check
      _
    $region3: #{tpu_custom_call.1} parent=1 // pred_check_branch
      %14 = sbr.rel (0) target = $region5
    $region4: #{tpu_custom_call.1} parent=1 // pred_region
      %16 = vsyncadd [#allocation5], 0
      %s18 = sshll.u32 %s0, 4
      %s19 = int_to_ptr.hbm [resolvable:$true] %s18
      %21 = dma.hbm_to_smem %s19, 16, [#allocation2], [#allocation5]
    $region5: #{tpu_custom_call.1} parent=1 // pred_fallthru
      _
    // Predicated region
    $region6: #{tpu_custom_call.1} parent=1 // pred_check
      _
    $region7: #{tpu_custom_call.1} parent=1 // pred_check_branch
      %23 = sbr.rel (0) target = $region9
    $region8: #{tpu_custom_call.1} parent=1 // pred_region
      %25 = vsyncadd [#allocation3], 0
      %s27 = sshll.u32 %s1, 4
      %s28 = int_to_ptr.hbm [resolvable:$true] %s27
      %s29 = sshll.u32 [#allocation6], 4
      %s30 = int_to_ptr.vmem [resolvable:$true] %s29
      %32 = dma.hbm_to_vmem [thread:$0]  %s28, 128, %s30, [#allocation3]
    $region9: #{tpu_custom_call.1} parent=1 // pred_fallthru
      _
    // Predicated region
    $region10: #{tpu_custom_call.1} parent=1 // pred_check
      _
    $region11: #{tpu_custom_call.1} parent=1 // pred_check_branch
      %34 = sbr.rel (0) target = $region13
    $region12: #{tpu_custom_call.1} parent=1 // pred_region
      %36 = vsyncadd [#allocation8], 0
      %s38 = sshll.u32 %s2, 4
      %s39 = int_to_ptr.hbm [resolvable:$true] %s38
      %s40 = sshll.u32 [#allocation7], 4
      %s41 = int_to_ptr.vmem [resolvable:$true] %s40
      %43 = dma.hbm_to_vmem [thread:$0]  %s39, 128, %s41, [#allocation8]
    $region13: #{tpu_custom_call.1} parent=1 // pred_fallthru
      _
    // Predicated region
    $region14: #{tpu_custom_call.1} parent=1 // pred_check
      _
    $region15: #{tpu_custom_call.1} parent=1 // pred_check_branch
      %45 = sbr.rel (0) target = $region17
    $region16: #{tpu_custom_call.1} parent=1 // pred_region
      %47 = vsyncadd [#allocation8], 0
      %s48 = sshll.u32 %s3, 4
      %s49 = int_to_ptr.hbm [resolvable:$true] %s48
      %s50 = sshll.u32 [#allocation9], 4
      %s51 = int_to_ptr.vmem [resolvable:$true] %s50
      %56 = dma.hbm_to_vmem [thread:$0]  %s49, 896, %s51, [#allocation8], 128, 128, 8
    $region17: #{tpu_custom_call.1} parent=1 // pred_fallthru
      _
    // Predicated region
    $region18: #{tpu_custom_call.1} parent=1 // pred_check
      _
    $region19: #{tpu_custom_call.1} parent=1 // pred_check_branch
      %58 = sbr.rel (0) target = $region21
    $region20: #{tpu_custom_call.1} parent=1 // pred_region
      %60 = dma.done [#allocation5], 16
    $region21: #{tpu_custom_call.1} parent=1 // pred_fallthru
      _
    // Predicated region
    $region22: #{tpu_custom_call.1} parent=1 // pred_check
      _
    $region23: #{tpu_custom_call.1} parent=1 // pred_check_branch
      %62 = sbr.rel (0) target = $region25
    $region24: #{tpu_custom_call.1} parent=1 // pred_region
      %64 = dma.done [#allocation3], 128
    $region25: #{tpu_custom_call.1} parent=1 // pred_fallthru
      _
    // Predicated region
    $region26: #{tpu_custom_call.1} parent=1 // pred_check
      _
    $region27: #{tpu_custom_call.1} parent=1 // pred_check_branch
      %66 = sbr.rel (0) target = $region29
    $region28: #{tpu_custom_call.1} parent=1 // pred_region
      %68 = dma.done [#allocation8], 128
    $region29: #{tpu_custom_call.1} parent=1 // pred_fallthru
      _
    // Predicated region
    $region30: #{tpu_custom_call.1} parent=1 // pred_check
      _
    $region31: #{tpu_custom_call.1} parent=1 // pred_check_branch
      %70 = sbr.rel (0) target = $region33
    $region32: #{tpu_custom_call.1} parent=1 // pred_region
      %72 = dma.done [#allocation8], 896
    $region33: #{tpu_custom_call.1} parent=1 // pred_fallthru
      _
    %73 = sfence
    %v74 = vld [vmem:[#allocation6] sm:$0xff]
    %v75 = vld [vmem:[#allocation7] sm:$0xff]
    %vm76 = vcmp.gt.f32.partialorder %v75, 0.0
    %v77 = vsel %vm76, 1, 0
    %v78 = vcvt.s32.f32 %v77
    %vm79 = vcmp.eq.f32.partialorder %v75, 0.0
    %v80 = vsel %vm79, 1, 0
    %v81 = vcvt.s32.f32 %v80
    %vm82 = vcmp.ge.f32.partialorder %v75, 0.0
    %v83 = vsel %vm82, 1, 0
    %v84 = vcvt.s32.f32 %v83
    %vm85 = vcmp.eq.f32.partialorder %v75, 1.0
    %v86 = vsel %vm85, 1, 0
    %v87 = vcvt.s32.f32 %v86
    %v88 = vmul.f32 %v78, %v74
    %v89 = vsub.f32 %v84, %v88
    %v90 = vmul.f32 %v81, %v74
    %v91 = vadd.f32 %v89, %v90
    %92 = vadd.xlane.f32.xlu0 %v91
    %v93 = vpop.xlane.xlu0 %92
    %v95 = vrot.slane %v74, 1
    %v96 = vrot.slane %v74, 2
    %v97 = vrot.slane %v74, 3
    %v98 = vrot.slane %v74, 4
    %v99 = vrot.slane %v74, 5
    %v100 = vrot.slane %v74, 6
    %v101 = vrot.slane %v74, 7
    %v102 = vperm.slane %v74, 0
    %v103 = vlaneseq
    %v104 = vshrl.u32 %v103, 7
    %106 = vset.pattern.permute.xlu0 %v104
    %107 = vperm.xlu0 %106, %v102
    %v108 = vpop.permute.xlu0 %107
    %v109 = vlaneseq
    %v110 = vshrl.u32 %v109, 7
    %v111 = vadd.s32 %v110, 8
    %112 = vset.pattern.permute.xlu0 %v111
    %113 = vperm.xlu0 %112, %v102
    %v114 = vpop.permute.xlu0 %113
    %v115 = vlaneseq
    %v116 = vshrl.u32 %v115, 7
    %v117 = vadd.s32 %v116, 16
    %118 = vset.pattern.permute.xlu0 %v117
    %119 = vperm.xlu0 %118, %v102
    %v120 = vpop.permute.xlu0 %119
    %v121 = vlaneseq
    %v122 = vshrl.u32 %v121, 7
    %v123 = vadd.s32 %v122, 24
    %124 = vset.pattern.permute.xlu0 %v123
    %125 = vperm.xlu0 %124, %v102
    %v126 = vpop.permute.xlu0 %125
    %v127 = vlaneseq
    %v128 = vshrl.u32 %v127, 7
    %v129 = vadd.s32 %v128, 32
    %130 = vset.pattern.permute.xlu0 %v129
    %131 = vperm.xlu0 %130, %v102
    %v132 = vpop.permute.xlu0 %131
    %v133 = vlaneseq
    %v134 = vshrl.u32 %v133, 7
    %v135 = vadd.s32 %v134, 40
    %136 = vset.pattern.permute.xlu0 %v135
    %137 = vperm.xlu0 %136, %v102
    %v138 = vpop.permute.xlu0 %137
    %v139 = vlaneseq
    %v140 = vshrl.u32 %v139, 7
    %v141 = vadd.s32 %v140, 48
    %142 = vset.pattern.permute.xlu0 %v141
    %143 = vperm.xlu0 %142, %v102
    %v144 = vpop.permute.xlu0 %143
    %v145 = vlaneseq
    %v146 = vshrl.u32 %v145, 7
    %v147 = vadd.s32 %v146, 56
    %148 = vset.pattern.permute.xlu0 %v147
    %149 = vperm.xlu0 %148, %v102
    %v150 = vpop.permute.xlu0 %149
    %v151 = vlaneseq
    %v152 = vshrl.u32 %v151, 7
    %v153 = vadd.s32 %v152, 64
    %154 = vset.pattern.permute.xlu0 %v153
    %155 = vperm.xlu0 %154, %v102
    %v156 = vpop.permute.xlu0 %155
    %v157 = vlaneseq
    %v158 = vshrl.u32 %v157, 7
    %v159 = vadd.s32 %v158, 72
    %160 = vset.pattern.permute.xlu0 %v159
    %161 = vperm.xlu0 %160, %v102
    %v162 = vpop.permute.xlu0 %161
    %v163 = vlaneseq
    %v164 = vshrl.u32 %v163, 7
    %v165 = vadd.s32 %v164, 80
    %166 = vset.pattern.permute.xlu0 %v165
    %167 = vperm.xlu0 %166, %v102
    %v168 = vpop.permute.xlu0 %167
    %v169 = vlaneseq
    %v170 = vshrl.u32 %v169, 7
    %v171 = vadd.s32 %v170, 88
    %172 = vset.pattern.permute.xlu0 %v171
    %173 = vperm.xlu0 %172, %v102
    %v174 = vpop.permute.xlu0 %173
    %v175 = vlaneseq
    %v176 = vshrl.u32 %v175, 7
    %v177 = vadd.s32 %v176, 96
    %178 = vset.pattern.permute.xlu0 %v177
    %179 = vperm.xlu0 %178, %v102
    %v180 = vpop.permute.xlu0 %179
    %v181 = vlaneseq
    %v182 = vshrl.u32 %v181, 7
    %v183 = vadd.s32 %v182, 104
    %184 = vset.pattern.permute.xlu0 %v183
    %185 = vperm.xlu0 %184, %v102
    %v186 = vpop.permute.xlu0 %185
    %v187 = vlaneseq
    %v188 = vshrl.u32 %v187, 7
    %v189 = vadd.s32 %v188, 112
    %190 = vset.pattern.permute.xlu0 %v189
    %191 = vperm.xlu0 %190, %v102
    %v192 = vpop.permute.xlu0 %191
    %v193 = vlaneseq
    %v194 = vshrl.u32 %v193, 7
    %v195 = vadd.s32 %v194, 120
    %196 = vset.pattern.permute.xlu0 %v195
    %197 = vperm.xlu0 %196, %v102
    %v198 = vpop.permute.xlu0 %197
    %v199 = vperm.slane %v74, 1
    %v200 = vlaneseq
    %v201 = vshrl.u32 %v200, 7
    %203 = vset.pattern.permute.xlu0 %v201
    %204 = vperm.xlu0 %203, %v199
    %v205 = vpop.permute.xlu0 %204
    %v206 = vlaneseq
    %v207 = vshrl.u32 %v206, 7
    %v208 = vadd.s32 %v207, 8
    %209 = vset.pattern.permute.xlu0 %v208
    %210 = vperm.xlu0 %209, %v199
    %v211 = vpop.permute.xlu0 %210
    %v212 = vlaneseq
    %v213 = vshrl.u32 %v212, 7
    %v214 = vadd.s32 %v213, 16
    %215 = vset.pattern.permute.xlu0 %v214
    %216 = vperm.xlu0 %215, %v199
    %v217 = vpop.permute.xlu0 %216
    %v218 = vlaneseq
    %v219 = vshrl.u32 %v218, 7
    %v220 = vadd.s32 %v219, 24
    %221 = vset.pattern.permute.xlu0 %v220
    %222 = vperm.xlu0 %221, %v199
    %v223 = vpop.permute.xlu0 %222
    %v224 = vlaneseq
    %v225 = vshrl.u32 %v224, 7
    %v226 = vadd.s32 %v225, 32
    %227 = vset.pattern.permute.xlu0 %v226
    %228 = vperm.xlu0 %227, %v199
    %v229 = vpop.permute.xlu0 %228
    %v230 = vlaneseq
    %v231 = vshrl.u32 %v230, 7
    %v232 = vadd.s32 %v231, 40
    %233 = vset.pattern.permute.xlu0 %v232
    %234 = vperm.xlu0 %233, %v199
    %v235 = vpop.permute.xlu0 %234
    %v236 = vlaneseq
    %v237 = vshrl.u32 %v236, 7
    %v238 = vadd.s32 %v237, 48
    %239 = vset.pattern.permute.xlu0 %v238
    %240 = vperm.xlu0 %239, %v199
    %v241 = vpop.permute.xlu0 %240
    %v242 = vlaneseq
    %v243 = vshrl.u32 %v242, 7
    %v244 = vadd.s32 %v243, 56
    %245 = vset.pattern.permute.xlu0 %v244
    %246 = vperm.xlu0 %245, %v199
    %v247 = vpop.permute.xlu0 %246
    %v248 = vlaneseq
    %v249 = vshrl.u32 %v248, 7
    %v250 = vadd.s32 %v249, 64
    %251 = vset.pattern.permute.xlu0 %v250
    %252 = vperm.xlu0 %251, %v199
    %v253 = vpop.permute.xlu0 %252
    %v254 = vlaneseq
    %v255 = vshrl.u32 %v254, 7
    %v256 = vadd.s32 %v255, 72
    %257 = vset.pattern.permute.xlu0 %v256
    %258 = vperm.xlu0 %257, %v199
    %v259 = vpop.permute.xlu0 %258
    %v260 = vlaneseq
    %v261 = vshrl.u32 %v260, 7
    %v262 = vadd.s32 %v261, 80
    %263 = vset.pattern.permute.xlu0 %v262
    %264 = vperm.xlu0 %263, %v199
    %v265 = vpop.permute.xlu0 %264
    %v266 = vlaneseq
    %v267 = vshrl.u32 %v266, 7
    %v268 = vadd.s32 %v267, 88
    %269 = vset.pattern.permute.xlu0 %v268
    %270 = vperm.xlu0 %269, %v199
    %v271 = vpop.permute.xlu0 %270
    %v272 = vlaneseq
    %v273 = vshrl.u32 %v272, 7
    %v274 = vadd.s32 %v273, 96
    %275 = vset.pattern.permute.xlu0 %v274
    %276 = vperm.xlu0 %275, %v199
    %v277 = vpop.permute.xlu0 %276
    %v278 = vlaneseq
    %v279 = vshrl.u32 %v278, 7
    %v280 = vadd.s32 %v279, 104
    %281 = vset.pattern.permute.xlu0 %v280
    %282 = vperm.xlu0 %281, %v199
    %v283 = vpop.permute.xlu0 %282
    %v284 = vlaneseq
    %v285 = vshrl.u32 %v284, 7
    %v286 = vadd.s32 %v285, 112
    %287 = vset.pattern.permute.xlu0 %v286
    %288 = vperm.xlu0 %287, %v199
    %v289 = vpop.permute.xlu0 %288
    %v290 = vlaneseq
    %v291 = vshrl.u32 %v290, 7
    %v292 = vadd.s32 %v291, 120
    %293 = vset.pattern.permute.xlu0 %v292
    %294 = vperm.xlu0 %293, %v199
    %v295 = vpop.permute.xlu0 %294
    %v296 = vperm.slane %v74, 2
    %v297 = vlaneseq
    %v298 = vshrl.u32 %v297, 7
    %300 = vset.pattern.permute.xlu0 %v298
    %301 = vperm.xlu0 %300, %v296
    %v302 = vpop.permute.xlu0 %301
    %v303 = vlaneseq
    %v304 = vshrl.u32 %v303, 7
    %v305 = vadd.s32 %v304, 8
    %306 = vset.pattern.permute.xlu0 %v305
    %307 = vperm.xlu0 %306, %v296
    %v308 = vpop.permute.xlu0 %307
    %v309 = vlaneseq
    %v310 = vshrl.u32 %v309, 7
    %v311 = vadd.s32 %v310, 16
    %312 = vset.pattern.permute.xlu0 %v311
    %313 = vperm.xlu0 %312, %v296
    %v314 = vpop.permute.xlu0 %313
    %v315 = vlaneseq
    %v316 = vshrl.u32 %v315, 7
    %v317 = vadd.s32 %v316, 24
    %318 = vset.pattern.permute.xlu0 %v317
    %319 = vperm.xlu0 %318, %v296
    %v320 = vpop.permute.xlu0 %319
    %v321 = vlaneseq
    %v322 = vshrl.u32 %v321, 7
    %v323 = vadd.s32 %v322, 32
    %324 = vset.pattern.permute.xlu0 %v323
    %325 = vperm.xlu0 %324, %v296
    %v326 = vpop.permute.xlu0 %325
    %v327 = vlaneseq
    %v328 = vshrl.u32 %v327, 7
    %v329 = vadd.s32 %v328, 40
    %330 = vset.pattern.permute.xlu0 %v329
    %331 = vperm.xlu0 %330, %v296
    %v332 = vpop.permute.xlu0 %331
    %v333 = vlaneseq
    %v334 = vshrl.u32 %v333, 7
    %v335 = vadd.s32 %v334, 48
    %336 = vset.pattern.permute.xlu0 %v335
    %337 = vperm.xlu0 %336, %v296
    %v338 = vpop.permute.xlu0 %337
    %v339 = vlaneseq
    %v340 = vshrl.u32 %v339, 7
    %v341 = vadd.s32 %v340, 56
    %342 = vset.pattern.permute.xlu0 %v341
    %343 = vperm.xlu0 %342, %v296
    %v344 = vpop.permute.xlu0 %343
    %v345 = vlaneseq
    %v346 = vshrl.u32 %v345, 7
    %v347 = vadd.s32 %v346, 64
    %348 = vset.pattern.permute.xlu0 %v347
    %349 = vperm.xlu0 %348, %v296
    %v350 = vpop.permute.xlu0 %349
    %v351 = vlaneseq
    %v352 = vshrl.u32 %v351, 7
    %v353 = vadd.s32 %v352, 72
    %354 = vset.pattern.permute.xlu0 %v353
    %355 = vperm.xlu0 %354, %v296
    %v356 = vpop.permute.xlu0 %355
    %v357 = vlaneseq
    %v358 = vshrl.u32 %v357, 7
    %v359 = vadd.s32 %v358, 80
    %360 = vset.pattern.permute.xlu0 %v359
    %361 = vperm.xlu0 %360, %v296
    %v362 = vpop.permute.xlu0 %361
    %v363 = vlaneseq
    %v364 = vshrl.u32 %v363, 7
    %v365 = vadd.s32 %v364, 88
    %366 = vset.pattern.permute.xlu0 %v365
    %367 = vperm.xlu0 %366, %v296
    %v368 = vpop.permute.xlu0 %367
    %v369 = vlaneseq
    %v370 = vshrl.u32 %v369, 7
    %v371 = vadd.s32 %v370, 96
    %372 = vset.pattern.permute.xlu0 %v371
    %373 = vperm.xlu0 %372, %v296
    %v374 = vpop.permute.xlu0 %373
    %v375 = vlaneseq
    %v376 = vshrl.u32 %v375, 7
    %v377 = vadd.s32 %v376, 104
    %378 = vset.pattern.permute.xlu0 %v377
    %379 = vperm.xlu0 %378, %v296
    %v380 = vpop.permute.xlu0 %379
    %v381 = vlaneseq
    %v382 = vshrl.u32 %v381, 7
    %v383 = vadd.s32 %v382, 112
    %384 = vset.pattern.permute.xlu0 %v383
    %385 = vperm.xlu0 %384, %v296
    %v386 = vpop.permute.xlu0 %385
    %v387 = vlaneseq
    %v388 = vshrl.u32 %v387, 7
    %v389 = vadd.s32 %v388, 120
    %390 = vset.pattern.permute.xlu0 %v389
    %391 = vperm.xlu0 %390, %v296
    %v392 = vpop.permute.xlu0 %391
    %v393 = vperm.slane %v74, 3
    %v394 = vlaneseq
    %v395 = vshrl.u32 %v394, 7
    %397 = vset.pattern.permute.xlu0 %v395
    %398 = vperm.xlu0 %397, %v393
    %v399 = vpop.permute.xlu0 %398
    %v400 = vlaneseq
    %v401 = vshrl.u32 %v400, 7
    %v402 = vadd.s32 %v401, 8
    %403 = vset.pattern.permute.xlu0 %v402
    %404 = vperm.xlu0 %403, %v393
    %v405 = vpop.permute.xlu0 %404
    %v406 = vlaneseq
    %v407 = vshrl.u32 %v406, 7
    %v408 = vadd.s32 %v407, 16
    %409 = vset.pattern.permute.xlu0 %v408
    %410 = vperm.xlu0 %409, %v393
    %v411 = vpop.permute.xlu0 %410
    %v412 = vlaneseq
    %v413 = vshrl.u32 %v412, 7
    %v414 = vadd.s32 %v413, 24
    %415 = vset.pattern.permute.xlu0 %v414
    %416 = vperm.xlu0 %415, %v393
    %v417 = vpop.permute.xlu0 %416
    %v418 = vlaneseq
    %v419 = vshrl.u32 %v418, 7
    %v420 = vadd.s32 %v419, 32
    %421 = vset.pattern.permute.xlu0 %v420
    %422 = vperm.xlu0 %421, %v393
    %v423 = vpop.permute.xlu0 %422
    %v424 = vlaneseq
    %v425 = vshrl.u32 %v424, 7
    %v426 = vadd.s32 %v425, 40
    %427 = vset.pattern.permute.xlu0 %v426
    %428 = vperm.xlu0 %427, %v393
    %v429 = vpop.permute.xlu0 %428
    %v430 = vlaneseq
    %v431 = vshrl.u32 %v430, 7
    %v432 = vadd.s32 %v431, 48
    %433 = vset.pattern.permute.xlu0 %v432
    %434 = vperm.xlu0 %433, %v393
    %v435 = vpop.permute.xlu0 %434
    %v436 = vlaneseq
    %v437 = vshrl.u32 %v436, 7
    %v438 = vadd.s32 %v437, 56
    %439 = vset.pattern.permute.xlu0 %v438
    %440 = vperm.xlu0 %439, %v393
    %v441 = vpop.permute.xlu0 %440
    %v442 = vlaneseq
    %v443 = vshrl.u32 %v442, 7
    %v444 = vadd.s32 %v443, 64
    %445 = vset.pattern.permute.xlu0 %v444
    %446 = vperm.xlu0 %445, %v393
    %v447 = vpop.permute.xlu0 %446
    %v448 = vlaneseq
    %v449 = vshrl.u32 %v448, 7
    %v450 = vadd.s32 %v449, 72
    %451 = vset.pattern.permute.xlu0 %v450
    %452 = vperm.xlu0 %451, %v393
    %v453 = vpop.permute.xlu0 %452
    %v454 = vlaneseq
    %v455 = vshrl.u32 %v454, 7
    %v456 = vadd.s32 %v455, 80
    %457 = vset.pattern.permute.xlu0 %v456
    %458 = vperm.xlu0 %457, %v393
    %v459 = vpop.permute.xlu0 %458
    %v460 = vlaneseq
    %v461 = vshrl.u32 %v460, 7
    %v462 = vadd.s32 %v461, 88
    %463 = vset.pattern.permute.xlu0 %v462
    %464 = vperm.xlu0 %463, %v393
    %v465 = vpop.permute.xlu0 %464
    %v466 = vlaneseq
    %v467 = vshrl.u32 %v466, 7
    %v468 = vadd.s32 %v467, 96
    %469 = vset.pattern.permute.xlu0 %v468
    %470 = vperm.xlu0 %469, %v393
    %v471 = vpop.permute.xlu0 %470
    %v472 = vlaneseq
    %v473 = vshrl.u32 %v472, 7
    %v474 = vadd.s32 %v473, 104
    %475 = vset.pattern.permute.xlu0 %v474
    %476 = vperm.xlu0 %475, %v393
    %v477 = vpop.permute.xlu0 %476
    %v478 = vlaneseq
    %v479 = vshrl.u32 %v478, 7
    %v480 = vadd.s32 %v479, 112
    %481 = vset.pattern.permute.xlu0 %v480
    %482 = vperm.xlu0 %481, %v393
    %v483 = vpop.permute.xlu0 %482
    %v484 = vlaneseq
    %v485 = vshrl.u32 %v484, 7
    %v486 = vadd.s32 %v485, 120
    %487 = vset.pattern.permute.xlu0 %v486
    %488 = vperm.xlu0 %487, %v393
    %v489 = vpop.permute.xlu0 %488
    %v490 = vperm.slane %v74, 4
    %v491 = vlaneseq
    %v492 = vshrl.u32 %v491, 7
    %494 = vset.pattern.permute.xlu0 %v492
    %495 = vperm.xlu0 %494, %v490
    %v496 = vpop.permute.xlu0 %495
    %v497 = vlaneseq
    %v498 = vshrl.u32 %v497, 7
    %v499 = vadd.s32 %v498, 8
    %500 = vset.pattern.permute.xlu0 %v499
    %501 = vperm.xlu0 %500, %v490
    %v502 = vpop.permute.xlu0 %501
    %v503 = vlaneseq
    %v504 = vshrl.u32 %v503, 7
    %v505 = vadd.s32 %v504, 16
    %506 = vset.pattern.permute.xlu0 %v505
    %507 = vperm.xlu0 %506, %v490
    %v508 = vpop.permute.xlu0 %507
    %v509 = vlaneseq
    %v510 = vshrl.u32 %v509, 7
    %v511 = vadd.s32 %v510, 24
    %512 = vset.pattern.permute.xlu0 %v511
    %513 = vperm.xlu0 %512, %v490
    %v514 = vpop.permute.xlu0 %513
    %v515 = vlaneseq
    %v516 = vshrl.u32 %v515, 7
    %v517 = vadd.s32 %v516, 32
    %518 = vset.pattern.permute.xlu0 %v517
    %519 = vperm.xlu0 %518, %v490
    %v520 = vpop.permute.xlu0 %519
    %v521 = vlaneseq
    %v522 = vshrl.u32 %v521, 7
    %v523 = vadd.s32 %v522, 40
    %524 = vset.pattern.permute.xlu0 %v523
    %525 = vperm.xlu0 %524, %v490
    %v526 = vpop.permute.xlu0 %525
    %v527 = vlaneseq
    %v528 = vshrl.u32 %v527, 7
    %v529 = vadd.s32 %v528, 48
    %530 = vset.pattern.permute.xlu0 %v529
    %531 = vperm.xlu0 %530, %v490
    %v532 = vpop.permute.xlu0 %531
    %v533 = vlaneseq
    %v534 = vshrl.u32 %v533, 7
    %v535 = vadd.s32 %v534, 56
    %536 = vset.pattern.permute.xlu0 %v535
    %537 = vperm.xlu0 %536, %v490
    %v538 = vpop.permute.xlu0 %537
    %v539 = vlaneseq
    %v540 = vshrl.u32 %v539, 7
    %v541 = vadd.s32 %v540, 64
    %542 = vset.pattern.permute.xlu0 %v541
    %543 = vperm.xlu0 %542, %v490
    %v544 = vpop.permute.xlu0 %543
    %v545 = vlaneseq
    %v546 = vshrl.u32 %v545, 7
    %v547 = vadd.s32 %v546, 72
    %548 = vset.pattern.permute.xlu0 %v547
    %549 = vperm.xlu0 %548, %v490
    %v550 = vpop.permute.xlu0 %549
    %v551 = vlaneseq
    %v552 = vshrl.u32 %v551, 7
    %v553 = vadd.s32 %v552, 80
    %554 = vset.pattern.permute.xlu0 %v553
    %555 = vperm.xlu0 %554, %v490
    %v556 = vpop.permute.xlu0 %555
    %v557 = vlaneseq
    %v558 = vshrl.u32 %v557, 7
    %v559 = vadd.s32 %v558, 88
    %560 = vset.pattern.permute.xlu0 %v559
    %561 = vperm.xlu0 %560, %v490
    %v562 = vpop.permute.xlu0 %561
    %v563 = vlaneseq
    %v564 = vshrl.u32 %v563, 7
    %v565 = vadd.s32 %v564, 96
    %566 = vset.pattern.permute.xlu0 %v565
    %567 = vperm.xlu0 %566, %v490
    %v568 = vpop.permute.xlu0 %567
    %v569 = vlaneseq
    %v570 = vshrl.u32 %v569, 7
    %v571 = vadd.s32 %v570, 104
    %572 = vset.pattern.permute.xlu0 %v571
    %573 = vperm.xlu0 %572, %v490
    %v574 = vpop.permute.xlu0 %573
    %v575 = vlaneseq
    %v576 = vshrl.u32 %v575, 7
    %v577 = vadd.s32 %v576, 112
    %578 = vset.pattern.permute.xlu0 %v577
    %579 = vperm.xlu0 %578, %v490
    %v580 = vpop.permute.xlu0 %579
    %v581 = vlaneseq
    %v582 = vshrl.u32 %v581, 7
    %v583 = vadd.s32 %v582, 120
    %584 = vset.pattern.permute.xlu0 %v583
    %585 = vperm.xlu0 %584, %v490
    %v586 = vpop.permute.xlu0 %585
    %v587 = vperm.slane %v74, 5
    %v588 = vlaneseq
    %v589 = vshrl.u32 %v588, 7
    %591 = vset.pattern.permute.xlu0 %v589
    %592 = vperm.xlu0 %591, %v587
    %v593 = vpop.permute.xlu0 %592
    %v594 = vlaneseq
    %v595 = vshrl.u32 %v594, 7
    %v596 = vadd.s32 %v595, 8
    %597 = vset.pattern.permute.xlu0 %v596
    %598 = vperm.xlu0 %597, %v587
    %v599 = vpop.permute.xlu0 %598
    %v600 = vlaneseq
    %v601 = vshrl.u32 %v600, 7
    %v602 = vadd.s32 %v601, 16
    %603 = vset.pattern.permute.xlu0 %v602
    %604 = vperm.xlu0 %603, %v587
    %v605 = vpop.permute.xlu0 %604
    %v606 = vlaneseq
    %v607 = vshrl.u32 %v606, 7
    %v608 = vadd.s32 %v607, 24
    %609 = vset.pattern.permute.xlu0 %v608
    %610 = vperm.xlu0 %609, %v587
    %v611 = vpop.permute.xlu0 %610
    %v612 = vlaneseq
    %v613 = vshrl.u32 %v612, 7
    %v614 = vadd.s32 %v613, 32
    %615 = vset.pattern.permute.xlu0 %v614
    %616 = vperm.xlu0 %615, %v587
    %v617 = vpop.permute.xlu0 %616
    %v618 = vlaneseq
    %v619 = vshrl.u32 %v618, 7
    %v620 = vadd.s32 %v619, 40
    %621 = vset.pattern.permute.xlu0 %v620
    %622 = vperm.xlu0 %621, %v587
    %v623 = vpop.permute.xlu0 %622
    %v624 = vlaneseq
    %v625 = vshrl.u32 %v624, 7
    %v626 = vadd.s32 %v625, 48
    %627 = vset.pattern.permute.xlu0 %v626
    %628 = vperm.xlu0 %627, %v587
    %v629 = vpop.permute.xlu0 %628
    %v630 = vlaneseq
    %v631 = vshrl.u32 %v630, 7
    %v632 = vadd.s32 %v631, 56
    %633 = vset.pattern.permute.xlu0 %v632
    %634 = vperm.xlu0 %633, %v587
    %v635 = vpop.permute.xlu0 %634
    %v636 = vlaneseq
    %v637 = vshrl.u32 %v636, 7
    %v638 = vadd.s32 %v637, 64
    %639 = vset.pattern.permute.xlu0 %v638
    %640 = vperm.xlu0 %639, %v587
    %v641 = vpop.permute.xlu0 %640
    %v642 = vlaneseq
    %v643 = vshrl.u32 %v642, 7
    %v644 = vadd.s32 %v643, 72
    %645 = vset.pattern.permute.xlu0 %v644
    %646 = vperm.xlu0 %645, %v587
    %v647 = vpop.permute.xlu0 %646
    %v648 = vlaneseq
    %v649 = vshrl.u32 %v648, 7
    %v650 = vadd.s32 %v649, 80
    %651 = vset.pattern.permute.xlu0 %v650
    %652 = vperm.xlu0 %651, %v587
    %v653 = vpop.permute.xlu0 %652
    %v654 = vlaneseq
    %v655 = vshrl.u32 %v654, 7
    %v656 = vadd.s32 %v655, 88
    %657 = vset.pattern.permute.xlu0 %v656
    %658 = vperm.xlu0 %657, %v587
    %v659 = vpop.permute.xlu0 %658
    %v660 = vlaneseq
    %v661 = vshrl.u32 %v660, 7
    %v662 = vadd.s32 %v661, 96
    %663 = vset.pattern.permute.xlu0 %v662
    %664 = vperm.xlu0 %663, %v587
    %v665 = vpop.permute.xlu0 %664
    %v666 = vlaneseq
    %v667 = vshrl.u32 %v666, 7
    %v668 = vadd.s32 %v667, 104
    %669 = vset.pattern.permute.xlu0 %v668
    %670 = vperm.xlu0 %669, %v587
    %v671 = vpop.permute.xlu0 %670
    %v672 = vlaneseq
    %v673 = vshrl.u32 %v672, 7
    %v674 = vadd.s32 %v673, 112
    %675 = vset.pattern.permute.xlu0 %v674
    %676 = vperm.xlu0 %675, %v587
    %v677 = vpop.permute.xlu0 %676
    %v678 = vlaneseq
    %v679 = vshrl.u32 %v678, 7
    %v680 = vadd.s32 %v679, 120
    %681 = vset.pattern.permute.xlu0 %v680
    %682 = vperm.xlu0 %681, %v587
    %v683 = vpop.permute.xlu0 %682
    %v684 = vperm.slane %v74, 6
    %v685 = vlaneseq
    %v686 = vshrl.u32 %v685, 7
    %688 = vset.pattern.permute.xlu0 %v686
    %689 = vperm.xlu0 %688, %v684
    %v690 = vpop.permute.xlu0 %689
    %v691 = vlaneseq
    %v692 = vshrl.u32 %v691, 7
    %v693 = vadd.s32 %v692, 8
    %694 = vset.pattern.permute.xlu0 %v693
    %695 = vperm.xlu0 %694, %v684
    %v696 = vpop.permute.xlu0 %695
    %v697 = vlaneseq
    %v698 = vshrl.u32 %v697, 7
    %v699 = vadd.s32 %v698, 16
    %700 = vset.pattern.permute.xlu0 %v699
    %701 = vperm.xlu0 %700, %v684
    %v702 = vpop.permute.xlu0 %701
    %v703 = vlaneseq
    %v704 = vshrl.u32 %v703, 7
    %v705 = vadd.s32 %v704, 24
    %706 = vset.pattern.permute.xlu0 %v705
    %707 = vperm.xlu0 %706, %v684
    %v708 = vpop.permute.xlu0 %707
    %v709 = vlaneseq
    %v710 = vshrl.u32 %v709, 7
    %v711 = vadd.s32 %v710, 32
    %712 = vset.pattern.permute.xlu0 %v711
    %713 = vperm.xlu0 %712, %v684
    %v714 = vpop.permute.xlu0 %713
    %v715 = vlaneseq
    %v716 = vshrl.u32 %v715, 7
    %v717 = vadd.s32 %v716, 40
    %718 = vset.pattern.permute.xlu0 %v717
    %719 = vperm.xlu0 %718, %v684
    %v720 = vpop.permute.xlu0 %719
    %v721 = vlaneseq
    %v722 = vshrl.u32 %v721, 7
    %v723 = vadd.s32 %v722, 48
    %724 = vset.pattern.permute.xlu0 %v723
    %725 = vperm.xlu0 %724, %v684
    %v726 = vpop.permute.xlu0 %725
    %v727 = vlaneseq
    %v728 = vshrl.u32 %v727, 7
    %v729 = vadd.s32 %v728, 56
    %730 = vset.pattern.permute.xlu0 %v729
    %731 = vperm.xlu0 %730, %v684
    %v732 = vpop.permute.xlu0 %731
    %v733 = vlaneseq
    %v734 = vshrl.u32 %v733, 7
    %v735 = vadd.s32 %v734, 64
    %736 = vset.pattern.permute.xlu0 %v735
    %737 = vperm.xlu0 %736, %v684
    %v738 = vpop.permute.xlu0 %737
    %v739 = vlaneseq
    %v740 = vshrl.u32 %v739, 7
    %v741 = vadd.s32 %v740, 72
    %742 = vset.pattern.permute.xlu0 %v741
    %743 = vperm.xlu0 %742, %v684
    %v744 = vpop.permute.xlu0 %743
    %v745 = vlaneseq
    %v746 = vshrl.u32 %v745, 7
    %v747 = vadd.s32 %v746, 80
    %748 = vset.pattern.permute.xlu0 %v747
    %749 = vperm.xlu0 %748, %v684
    %v750 = vpop.permute.xlu0 %749
    %v751 = vlaneseq
    %v752 = vshrl.u32 %v751, 7
    %v753 = vadd.s32 %v752, 88
    %754 = vset.pattern.permute.xlu0 %v753
    %755 = vperm.xlu0 %754, %v684
    %v756 = vpop.permute.xlu0 %755
    %v757 = vlaneseq
    %v758 = vshrl.u32 %v757, 7
    %v759 = vadd.s32 %v758, 96
    %760 = vset.pattern.permute.xlu0 %v759
    %761 = vperm.xlu0 %760, %v684
    %v762 = vpop.permute.xlu0 %761
    %v763 = vlaneseq
    %v764 = vshrl.u32 %v763, 7
    %v765 = vadd.s32 %v764, 104
    %766 = vset.pattern.permute.xlu0 %v765
    %767 = vperm.xlu0 %766, %v684
    %v768 = vpop.permute.xlu0 %767
    %v769 = vlaneseq
    %v770 = vshrl.u32 %v769, 7
    %v771 = vadd.s32 %v770, 112
    %772 = vset.pattern.permute.xlu0 %v771
    %773 = vperm.xlu0 %772, %v684
    %v774 = vpop.permute.xlu0 %773
    %v775 = vlaneseq
    %v776 = vshrl.u32 %v775, 7
    %v777 = vadd.s32 %v776, 120
    %778 = vset.pattern.permute.xlu0 %v777
    %779 = vperm.xlu0 %778, %v684
    %v780 = vpop.permute.xlu0 %779
    %v781 = vperm.slane %v74, 7
    %v782 = vlaneseq
    %v783 = vshrl.u32 %v782, 7
    %785 = vset.pattern.permute.xlu0 %v783
    %786 = vperm.xlu0 %785, %v781
    %v787 = vpop.permute.xlu0 %786
    %v788 = vlaneseq
    %v789 = vshrl.u32 %v788, 7
    %v790 = vadd.s32 %v789, 8
    %791 = vset.pattern.permute.xlu0 %v790
    %792 = vperm.xlu0 %791, %v781
    %v793 = vpop.permute.xlu0 %792
    %v794 = vlaneseq
    %v795 = vshrl.u32 %v794, 7
    %v796 = vadd.s32 %v795, 16
    %797 = vset.pattern.permute.xlu0 %v796
    %798 = vperm.xlu0 %797, %v781
    %v799 = vpop.permute.xlu0 %798
    %v800 = vlaneseq
    %v801 = vshrl.u32 %v800, 7
    %v802 = vadd.s32 %v801, 24
    %803 = vset.pattern.permute.xlu0 %v802
    %804 = vperm.xlu0 %803, %v781
    %v805 = vpop.permute.xlu0 %804
    %v806 = vlaneseq
    %v807 = vshrl.u32 %v806, 7
    %v808 = vadd.s32 %v807, 32
    %809 = vset.pattern.permute.xlu0 %v808
    %810 = vperm.xlu0 %809, %v781
    %v811 = vpop.permute.xlu0 %810
    %v812 = vlaneseq
    %v813 = vshrl.u32 %v812, 7
    %v814 = vadd.s32 %v813, 40
    %815 = vset.pattern.permute.xlu0 %v814
    %816 = vperm.xlu0 %815, %v781
    %v817 = vpop.permute.xlu0 %816
    %v818 = vlaneseq
    %v819 = vshrl.u32 %v818, 7
    %v820 = vadd.s32 %v819, 48
    %821 = vset.pattern.permute.xlu0 %v820
    %822 = vperm.xlu0 %821, %v781
    %v823 = vpop.permute.xlu0 %822
    %v824 = vlaneseq
    %v825 = vshrl.u32 %v824, 7
    %v826 = vadd.s32 %v825, 56
    %827 = vset.pattern.permute.xlu0 %v826
    %828 = vperm.xlu0 %827, %v781
    %v829 = vpop.permute.xlu0 %828
    %v830 = vlaneseq
    %v831 = vshrl.u32 %v830, 7
    %v832 = vadd.s32 %v831, 64
    %833 = vset.pattern.permute.xlu0 %v832
    %834 = vperm.xlu0 %833, %v781
    %v835 = vpop.permute.xlu0 %834
    %v836 = vlaneseq
    %v837 = vshrl.u32 %v836, 7
    %v838 = vadd.s32 %v837, 72
    %839 = vset.pattern.permute.xlu0 %v838
    %840 = vperm.xlu0 %839, %v781
    %v841 = vpop.permute.xlu0 %840
    %v842 = vlaneseq
    %v843 = vshrl.u32 %v842, 7
    %v844 = vadd.s32 %v843, 80
    %845 = vset.pattern.permute.xlu0 %v844
    %846 = vperm.xlu0 %845, %v781
    %v847 = vpop.permute.xlu0 %846
    %v848 = vlaneseq
    %v849 = vshrl.u32 %v848, 7
    %v850 = vadd.s32 %v849, 88
    %851 = vset.pattern.permute.xlu0 %v850
    %852 = vperm.xlu0 %851, %v781
    %v853 = vpop.permute.xlu0 %852
    %v854 = vlaneseq
    %v855 = vshrl.u32 %v854, 7
    %v856 = vadd.s32 %v855, 96
    %857 = vset.pattern.permute.xlu0 %v856
    %858 = vperm.xlu0 %857, %v781
    %v859 = vpop.permute.xlu0 %858
    %v860 = vlaneseq
    %v861 = vshrl.u32 %v860, 7
    %v862 = vadd.s32 %v861, 104
    %863 = vset.pattern.permute.xlu0 %v862
    %864 = vperm.xlu0 %863, %v781
    %v865 = vpop.permute.xlu0 %864
    %v866 = vlaneseq
    %v867 = vshrl.u32 %v866, 7
    %v868 = vadd.s32 %v867, 112
    %869 = vset.pattern.permute.xlu0 %v868
    %870 = vperm.xlu0 %869, %v781
    %v871 = vpop.permute.xlu0 %870
    %v872 = vlaneseq
    %v873 = vshrl.u32 %v872, 7
    %v874 = vadd.s32 %v873, 120
    %875 = vset.pattern.permute.xlu0 %v874
    %876 = vperm.xlu0 %875, %v781
    %v877 = vpop.permute.xlu0 %876
    %v878 = vperm.slane %v74, 0
    %v879 = vperm.slane %v95, 0
    %v880 = vperm.slane %v96, 0
    %v881 = vperm.slane %v97, 0
    %v882 = vperm.slane %v98, 0
    %v883 = vperm.slane %v99, 0
    %v884 = vperm.slane %v100, 0
    %v885 = vperm.slane %v101, 0
    %vm894 = vcmp.ge.f32.partialorder %v878, %v108
    %vm895 = vcmp.ge.f32.partialorder %v878, %v114
    %vm896 = vcmp.ge.f32.partialorder %v878, %v120
    %vm897 = vcmp.ge.f32.partialorder %v878, %v126
    %vm898 = vcmp.ge.f32.partialorder %v878, %v132
    %vm899 = vcmp.ge.f32.partialorder %v878, %v138
    %vm900 = vcmp.ge.f32.partialorder %v878, %v144
    %vm901 = vcmp.ge.f32.partialorder %v878, %v150
    %vm902 = vcmp.ge.f32.partialorder %v878, %v156
    %vm903 = vcmp.ge.f32.partialorder %v878, %v162
    %vm904 = vcmp.ge.f32.partialorder %v878, %v168
    %vm905 = vcmp.ge.f32.partialorder %v878, %v174
    %vm906 = vcmp.ge.f32.partialorder %v878, %v180
    %vm907 = vcmp.ge.f32.partialorder %v878, %v186
    %vm908 = vcmp.ge.f32.partialorder %v878, %v192
    %vm909 = vcmp.ge.f32.partialorder %v878, %v198
    %vm910 = vcmp.ge.f32.partialorder %v879, %v205
    %vm911 = vcmp.ge.f32.partialorder %v879, %v211
    %vm912 = vcmp.ge.f32.partialorder %v879, %v217
    %vm913 = vcmp.ge.f32.partialorder %v879, %v223
    %vm914 = vcmp.ge.f32.partialorder %v879, %v229
    %vm915 = vcmp.ge.f32.partialorder %v879, %v235
    %vm916 = vcmp.ge.f32.partialorder %v879, %v241
    %vm917 = vcmp.ge.f32.partialorder %v879, %v247
    %vm918 = vcmp.ge.f32.partialorder %v879, %v253
    %vm919 = vcmp.ge.f32.partialorder %v879, %v259
    %vm920 = vcmp.ge.f32.partialorder %v879, %v265
    %vm921 = vcmp.ge.f32.partialorder %v879, %v271
    %vm922 = vcmp.ge.f32.partialorder %v879, %v277
    %vm923 = vcmp.ge.f32.partialorder %v879, %v283
    %vm924 = vcmp.ge.f32.partialorder %v879, %v289
    %vm925 = vcmp.ge.f32.partialorder %v879, %v295
    %vm926 = vcmp.ge.f32.partialorder %v880, %v302
    %vm927 = vcmp.ge.f32.partialorder %v880, %v308
    %vm928 = vcmp.ge.f32.partialorder %v880, %v314
    %vm929 = vcmp.ge.f32.partialorder %v880, %v320
    %vm930 = vcmp.ge.f32.partialorder %v880, %v326
    %vm931 = vcmp.ge.f32.partialorder %v880, %v332
    %vm932 = vcmp.ge.f32.partialorder %v880, %v338
    %vm933 = vcmp.ge.f32.partialorder %v880, %v344
    %vm934 = vcmp.ge.f32.partialorder %v880, %v350
    %vm935 = vcmp.ge.f32.partialorder %v880, %v356
    %vm936 = vcmp.ge.f32.partialorder %v880, %v362
    %vm937 = vcmp.ge.f32.partialorder %v880, %v368
    %vm938 = vcmp.ge.f32.partialorder %v880, %v374
    %vm939 = vcmp.ge.f32.partialorder %v880, %v380
    %vm940 = vcmp.ge.f32.partialorder %v880, %v386
    %vm941 = vcmp.ge.f32.partialorder %v880, %v392
    %vm942 = vcmp.ge.f32.partialorder %v881, %v399
    %vm943 = vcmp.ge.f32.partialorder %v881, %v405
    %vm944 = vcmp.ge.f32.partialorder %v881, %v411
    %vm945 = vcmp.ge.f32.partialorder %v881, %v417
    %vm946 = vcmp.ge.f32.partialorder %v881, %v423
    %vm947 = vcmp.ge.f32.partialorder %v881, %v429
    %vm948 = vcmp.ge.f32.partialorder %v881, %v435
    %vm949 = vcmp.ge.f32.partialorder %v881, %v441
    %vm950 = vcmp.ge.f32.partialorder %v881, %v447
    %vm951 = vcmp.ge.f32.partialorder %v881, %v453
    %vm952 = vcmp.ge.f32.partialorder %v881, %v459
    %vm953 = vcmp.ge.f32.partialorder %v881, %v465
    %vm954 = vcmp.ge.f32.partialorder %v881, %v471
    %vm955 = vcmp.ge.f32.partialorder %v881, %v477
    %vm956 = vcmp.ge.f32.partialorder %v881, %v483
    %vm957 = vcmp.ge.f32.partialorder %v881, %v489
    %vm958 = vcmp.ge.f32.partialorder %v882, %v496
    %vm959 = vcmp.ge.f32.partialorder %v882, %v502
    %vm960 = vcmp.ge.f32.partialorder %v882, %v508
    %vm961 = vcmp.ge.f32.partialorder %v882, %v514
    %vm962 = vcmp.ge.f32.partialorder %v882, %v520
    %vm963 = vcmp.ge.f32.partialorder %v882, %v526
    %vm964 = vcmp.ge.f32.partialorder %v882, %v532
    %vm965 = vcmp.ge.f32.partialorder %v882, %v538
    %vm966 = vcmp.ge.f32.partialorder %v882, %v544
    %vm967 = vcmp.ge.f32.partialorder %v882, %v550
    %vm968 = vcmp.ge.f32.partialorder %v882, %v556
    %vm969 = vcmp.ge.f32.partialorder %v882, %v562
    %vm970 = vcmp.ge.f32.partialorder %v882, %v568
    %vm971 = vcmp.ge.f32.partialorder %v882, %v574
    %vm972 = vcmp.ge.f32.partialorder %v882, %v580
    %vm973 = vcmp.ge.f32.partialorder %v882, %v586
    %vm974 = vcmp.ge.f32.partialorder %v883, %v593
    %vm975 = vcmp.ge.f32.partialorder %v883, %v599
    %vm976 = vcmp.ge.f32.partialorder %v883, %v605
    %vm977 = vcmp.ge.f32.partialorder %v883, %v611
    %vm978 = vcmp.ge.f32.partialorder %v883, %v617
    %vm979 = vcmp.ge.f32.partialorder %v883, %v623
    %vm980 = vcmp.ge.f32.partialorder %v883, %v629
    %vm981 = vcmp.ge.f32.partialorder %v883, %v635
    %vm982 = vcmp.ge.f32.partialorder %v883, %v641
    %vm983 = vcmp.ge.f32.partialorder %v883, %v647
    %vm984 = vcmp.ge.f32.partialorder %v883, %v653
    %vm985 = vcmp.ge.f32.partialorder %v883, %v659
    %vm986 = vcmp.ge.f32.partialorder %v883, %v665
    %vm987 = vcmp.ge.f32.partialorder %v883, %v671
    %vm988 = vcmp.ge.f32.partialorder %v883, %v677
    %vm989 = vcmp.ge.f32.partialorder %v883, %v683
    %vm990 = vcmp.ge.f32.partialorder %v884, %v690
    %vm991 = vcmp.ge.f32.partialorder %v884, %v696
    %vm992 = vcmp.ge.f32.partialorder %v884, %v702
    %vm993 = vcmp.ge.f32.partialorder %v884, %v708
    %vm994 = vcmp.ge.f32.partialorder %v884, %v714
    %vm995 = vcmp.ge.f32.partialorder %v884, %v720
    %vm996 = vcmp.ge.f32.partialorder %v884, %v726
    %vm997 = vcmp.ge.f32.partialorder %v884, %v732
    %vm998 = vcmp.ge.f32.partialorder %v884, %v738
    %vm999 = vcmp.ge.f32.partialorder %v884, %v744
    %vm1000 = vcmp.ge.f32.partialorder %v884, %v750
    %vm1001 = vcmp.ge.f32.partialorder %v884, %v756
    %vm1002 = vcmp.ge.f32.partialorder %v884, %v762
    %vm1003 = vcmp.ge.f32.partialorder %v884, %v768
    %vm1004 = vcmp.ge.f32.partialorder %v884, %v774
    %vm1005 = vcmp.ge.f32.partialorder %v884, %v780
    %vm1006 = vcmp.ge.f32.partialorder %v885, %v787
    %vm1007 = vcmp.ge.f32.partialorder %v885, %v793
    %vm1008 = vcmp.ge.f32.partialorder %v885, %v799
    %vm1009 = vcmp.ge.f32.partialorder %v885, %v805
    %vm1010 = vcmp.ge.f32.partialorder %v885, %v811
    %vm1011 = vcmp.ge.f32.partialorder %v885, %v817
    %vm1012 = vcmp.ge.f32.partialorder %v885, %v823
    %vm1013 = vcmp.ge.f32.partialorder %v885, %v829
    %vm1014 = vcmp.ge.f32.partialorder %v885, %v835
    %vm1015 = vcmp.ge.f32.partialorder %v885, %v841
    %vm1016 = vcmp.ge.f32.partialorder %v885, %v847
    %vm1017 = vcmp.ge.f32.partialorder %v885, %v853
    %vm1018 = vcmp.ge.f32.partialorder %v885, %v859
    %vm1019 = vcmp.ge.f32.partialorder %v885, %v865
    %vm1020 = vcmp.ge.f32.partialorder %v885, %v871
    %vm1021 = vcmp.ge.f32.partialorder %v885, %v877
    %v1023 = vrot.slane %v81, 1
    %v1024 = vrot.slane %v81, 2
    %v1025 = vrot.slane %v81, 3
    %v1026 = vrot.slane %v81, 4
    %v1027 = vrot.slane %v81, 5
    %v1028 = vrot.slane %v81, 6
    %v1029 = vrot.slane %v81, 7
    %v1030 = vperm.slane %v81, 0
    %v1031 = vperm.slane %v1023, 0
    %v1032 = vperm.slane %v1024, 0
    %v1033 = vperm.slane %v1025, 0
    %v1034 = vperm.slane %v1026, 0
    %v1035 = vperm.slane %v1027, 0
    %v1036 = vperm.slane %v1028, 0
    %v1037 = vperm.slane %v1029, 0
    %v1046 = vsel %vm894, %v1030, 0.0
    %v1047 = vsel %vm895, %v1030, 0.0
    %v1048 = vsel %vm896, %v1030, 0.0
    %v1049 = vsel %vm897, %v1030, 0.0
    %v1050 = vsel %vm898, %v1030, 0.0
    %v1051 = vsel %vm899, %v1030, 0.0
    %v1052 = vsel %vm900, %v1030, 0.0
    %v1053 = vsel %vm901, %v1030, 0.0
    %v1054 = vsel %vm902, %v1030, 0.0
    %v1055 = vsel %vm903, %v1030, 0.0
    %v1056 = vsel %vm904, %v1030, 0.0
    %v1057 = vsel %vm905, %v1030, 0.0
    %v1058 = vsel %vm906, %v1030, 0.0
    %v1059 = vsel %vm907, %v1030, 0.0
    %v1060 = vsel %vm908, %v1030, 0.0
    %v1061 = vsel %vm909, %v1030, 0.0
    %v1062 = vsel %vm910, %v1031, 0.0
    %v1063 = vsel %vm911, %v1031, 0.0
    %v1064 = vsel %vm912, %v1031, 0.0
    %v1065 = vsel %vm913, %v1031, 0.0
    %v1066 = vsel %vm914, %v1031, 0.0
    %v1067 = vsel %vm915, %v1031, 0.0
    %v1068 = vsel %vm916, %v1031, 0.0
    %v1069 = vsel %vm917, %v1031, 0.0
    %v1070 = vsel %vm918, %v1031, 0.0
    %v1071 = vsel %vm919, %v1031, 0.0
    %v1072 = vsel %vm920, %v1031, 0.0
    %v1073 = vsel %vm921, %v1031, 0.0
    %v1074 = vsel %vm922, %v1031, 0.0
    %v1075 = vsel %vm923, %v1031, 0.0
    %v1076 = vsel %vm924, %v1031, 0.0
    %v1077 = vsel %vm925, %v1031, 0.0
    %v1078 = vsel %vm926, %v1032, 0.0
    %v1079 = vsel %vm927, %v1032, 0.0
    %v1080 = vsel %vm928, %v1032, 0.0
    %v1081 = vsel %vm929, %v1032, 0.0
    %v1082 = vsel %vm930, %v1032, 0.0
    %v1083 = vsel %vm931, %v1032, 0.0
    %v1084 = vsel %vm932, %v1032, 0.0
    %v1085 = vsel %vm933, %v1032, 0.0
    %v1086 = vsel %vm934, %v1032, 0.0
    %v1087 = vsel %vm935, %v1032, 0.0
    %v1088 = vsel %vm936, %v1032, 0.0
    %v1089 = vsel %vm937, %v1032, 0.0
    %v1090 = vsel %vm938, %v1032, 0.0
    %v1091 = vsel %vm939, %v1032, 0.0
    %v1092 = vsel %vm940, %v1032, 0.0
    %v1093 = vsel %vm941, %v1032, 0.0
    %v1094 = vsel %vm942, %v1033, 0.0
    %v1095 = vsel %vm943, %v1033, 0.0
    %v1096 = vsel %vm944, %v1033, 0.0
    %v1097 = vsel %vm945, %v1033, 0.0
    %v1098 = vsel %vm946, %v1033, 0.0
    %v1099 = vsel %vm947, %v1033, 0.0
    %v1100 = vsel %vm948, %v1033, 0.0
    %v1101 = vsel %vm949, %v1033, 0.0
    %v1102 = vsel %vm950, %v1033, 0.0
    %v1103 = vsel %vm951, %v1033, 0.0
    %v1104 = vsel %vm952, %v1033, 0.0
    %v1105 = vsel %vm953, %v1033, 0.0
    %v1106 = vsel %vm954, %v1033, 0.0
    %v1107 = vsel %vm955, %v1033, 0.0
    %v1108 = vsel %vm956, %v1033, 0.0
    %v1109 = vsel %vm957, %v1033, 0.0
    %v1110 = vsel %vm958, %v1034, 0.0
    %v1111 = vsel %vm959, %v1034, 0.0
    %v1112 = vsel %vm960, %v1034, 0.0
    %v1113 = vsel %vm961, %v1034, 0.0
    %v1114 = vsel %vm962, %v1034, 0.0
    %v1115 = vsel %vm963, %v1034, 0.0
    %v1116 = vsel %vm964, %v1034, 0.0
    %v1117 = vsel %vm965, %v1034, 0.0
    %v1118 = vsel %vm966, %v1034, 0.0
    %v1119 = vsel %vm967, %v1034, 0.0
    %v1120 = vsel %vm968, %v1034, 0.0
    %v1121 = vsel %vm969, %v1034, 0.0
    %v1122 = vsel %vm970, %v1034, 0.0
    %v1123 = vsel %vm971, %v1034, 0.0
    %v1124 = vsel %vm972, %v1034, 0.0
    %v1125 = vsel %vm973, %v1034, 0.0
    %v1126 = vsel %vm974, %v1035, 0.0
    %v1127 = vsel %vm975, %v1035, 0.0
    %v1128 = vsel %vm976, %v1035, 0.0
    %v1129 = vsel %vm977, %v1035, 0.0
    %v1130 = vsel %vm978, %v1035, 0.0
    %v1131 = vsel %vm979, %v1035, 0.0
    %v1132 = vsel %vm980, %v1035, 0.0
    %v1133 = vsel %vm981, %v1035, 0.0
    %v1134 = vsel %vm982, %v1035, 0.0
    %v1135 = vsel %vm983, %v1035, 0.0
    %v1136 = vsel %vm984, %v1035, 0.0
    %v1137 = vsel %vm985, %v1035, 0.0
    %v1138 = vsel %vm986, %v1035, 0.0
    %v1139 = vsel %vm987, %v1035, 0.0
    %v1140 = vsel %vm988, %v1035, 0.0
    %v1141 = vsel %vm989, %v1035, 0.0
    %v1142 = vsel %vm990, %v1036, 0.0
    %v1143 = vsel %vm991, %v1036, 0.0
    %v1144 = vsel %vm992, %v1036, 0.0
    %v1145 = vsel %vm993, %v1036, 0.0
    %v1146 = vsel %vm994, %v1036, 0.0
    %v1147 = vsel %vm995, %v1036, 0.0
    %v1148 = vsel %vm996, %v1036, 0.0
    %v1149 = vsel %vm997, %v1036, 0.0
    %v1150 = vsel %vm998, %v1036, 0.0
    %v1151 = vsel %vm999, %v1036, 0.0
    %v1152 = vsel %vm1000, %v1036, 0.0
    %v1153 = vsel %vm1001, %v1036, 0.0
    %v1154 = vsel %vm1002, %v1036, 0.0
    %v1155 = vsel %vm1003, %v1036, 0.0
    %v1156 = vsel %vm1004, %v1036, 0.0
    %v1157 = vsel %vm1005, %v1036, 0.0
    %v1158 = vsel %vm1006, %v1037, 0.0
    %v1159 = vsel %vm1007, %v1037, 0.0
    %v1160 = vsel %vm1008, %v1037, 0.0
    %v1161 = vsel %vm1009, %v1037, 0.0
    %v1162 = vsel %vm1010, %v1037, 0.0
    %v1163 = vsel %vm1011, %v1037, 0.0
    %v1164 = vsel %vm1012, %v1037, 0.0
    %v1165 = vsel %vm1013, %v1037, 0.0
    %v1166 = vsel %vm1014, %v1037, 0.0
    %v1167 = vsel %vm1015, %v1037, 0.0
    %v1168 = vsel %vm1016, %v1037, 0.0
    %v1169 = vsel %vm1017, %v1037, 0.0
    %v1170 = vsel %vm1018, %v1037, 0.0
    %v1171 = vsel %vm1019, %v1037, 0.0
    %v1172 = vsel %vm1020, %v1037, 0.0
    %v1173 = vsel %vm1021, %v1037, 0.0
    %1174 = vadd.xlane.f32.xlu0 %v1046
    %v1175 = vpop.xlane.xlu0 %1174
    %1176 = vadd.xlane.f32.xlu0 %v1047
    %v1177 = vpop.xlane.xlu0 %1176
    %1178 = vadd.xlane.f32.xlu0 %v1048
    %v1179 = vpop.xlane.xlu0 %1178
    %1180 = vadd.xlane.f32.xlu0 %v1049
    %v1181 = vpop.xlane.xlu0 %1180
    %1182 = vadd.xlane.f32.xlu0 %v1050
    %v1183 = vpop.xlane.xlu0 %1182
    %1184 = vadd.xlane.f32.xlu0 %v1051
    %v1185 = vpop.xlane.xlu0 %1184
    %1186 = vadd.xlane.f32.xlu0 %v1052
    %v1187 = vpop.xlane.xlu0 %1186
    %1188 = vadd.xlane.f32.xlu0 %v1053
    %v1189 = vpop.xlane.xlu0 %1188
    %1190 = vadd.xlane.f32.xlu0 %v1054
    %v1191 = vpop.xlane.xlu0 %1190
    %1192 = vadd.xlane.f32.xlu0 %v1055
    %v1193 = vpop.xlane.xlu0 %1192
    %1194 = vadd.xlane.f32.xlu0 %v1056
    %v1195 = vpop.xlane.xlu0 %1194
    %1196 = vadd.xlane.f32.xlu0 %v1057
    %v1197 = vpop.xlane.xlu0 %1196
    %1198 = vadd.xlane.f32.xlu0 %v1058
    %v1199 = vpop.xlane.xlu0 %1198
    %1200 = vadd.xlane.f32.xlu0 %v1059
    %v1201 = vpop.xlane.xlu0 %1200
    %1202 = vadd.xlane.f32.xlu0 %v1060
    %v1203 = vpop.xlane.xlu0 %1202
    %1204 = vadd.xlane.f32.xlu0 %v1061
    %v1205 = vpop.xlane.xlu0 %1204
    %1206 = vadd.xlane.f32.xlu0 %v1062
    %v1207 = vpop.xlane.xlu0 %1206
    %1208 = vadd.xlane.f32.xlu0 %v1063
    %v1209 = vpop.xlane.xlu0 %1208
    %1210 = vadd.xlane.f32.xlu0 %v1064
    %v1211 = vpop.xlane.xlu0 %1210
    %1212 = vadd.xlane.f32.xlu0 %v1065
    %v1213 = vpop.xlane.xlu0 %1212
    %1214 = vadd.xlane.f32.xlu0 %v1066
    %v1215 = vpop.xlane.xlu0 %1214
    %1216 = vadd.xlane.f32.xlu0 %v1067
    %v1217 = vpop.xlane.xlu0 %1216
    %1218 = vadd.xlane.f32.xlu0 %v1068
    %v1219 = vpop.xlane.xlu0 %1218
    %1220 = vadd.xlane.f32.xlu0 %v1069
    %v1221 = vpop.xlane.xlu0 %1220
    %1222 = vadd.xlane.f32.xlu0 %v1070
    %v1223 = vpop.xlane.xlu0 %1222
    %1224 = vadd.xlane.f32.xlu0 %v1071
    %v1225 = vpop.xlane.xlu0 %1224
    %1226 = vadd.xlane.f32.xlu0 %v1072
    %v1227 = vpop.xlane.xlu0 %1226
    %1228 = vadd.xlane.f32.xlu0 %v1073
    %v1229 = vpop.xlane.xlu0 %1228
    %1230 = vadd.xlane.f32.xlu0 %v1074
    %v1231 = vpop.xlane.xlu0 %1230
    %1232 = vadd.xlane.f32.xlu0 %v1075
    %v1233 = vpop.xlane.xlu0 %1232
    %1234 = vadd.xlane.f32.xlu0 %v1076
    %v1235 = vpop.xlane.xlu0 %1234
    %1236 = vadd.xlane.f32.xlu0 %v1077
    %v1237 = vpop.xlane.xlu0 %1236
    %1238 = vadd.xlane.f32.xlu0 %v1078
    %v1239 = vpop.xlane.xlu0 %1238
    %1240 = vadd.xlane.f32.xlu0 %v1079
    %v1241 = vpop.xlane.xlu0 %1240
    %1242 = vadd.xlane.f32.xlu0 %v1080
    %v1243 = vpop.xlane.xlu0 %1242
    %1244 = vadd.xlane.f32.xlu0 %v1081
    %v1245 = vpop.xlane.xlu0 %1244
    %1246 = vadd.xlane.f32.xlu0 %v1082
    %v1247 = vpop.xlane.xlu0 %1246
    %1248 = vadd.xlane.f32.xlu0 %v1083
    %v1249 = vpop.xlane.xlu0 %1248
    %1250 = vadd.xlane.f32.xlu0 %v1084
    %v1251 = vpop.xlane.xlu0 %1250
    %1252 = vadd.xlane.f32.xlu0 %v1085
    %v1253 = vpop.xlane.xlu0 %1252
    %1254 = vadd.xlane.f32.xlu0 %v1086
    %v1255 = vpop.xlane.xlu0 %1254
    %1256 = vadd.xlane.f32.xlu0 %v1087
    %v1257 = vpop.xlane.xlu0 %1256
    %1258 = vadd.xlane.f32.xlu0 %v1088
    %v1259 = vpop.xlane.xlu0 %1258
    %1260 = vadd.xlane.f32.xlu0 %v1089
    %v1261 = vpop.xlane.xlu0 %1260
    %1262 = vadd.xlane.f32.xlu0 %v1090
    %v1263 = vpop.xlane.xlu0 %1262
    %1264 = vadd.xlane.f32.xlu0 %v1091
    %v1265 = vpop.xlane.xlu0 %1264
    %1266 = vadd.xlane.f32.xlu0 %v1092
    %v1267 = vpop.xlane.xlu0 %1266
    %1268 = vadd.xlane.f32.xlu0 %v1093
    %v1269 = vpop.xlane.xlu0 %1268
    %1270 = vadd.xlane.f32.xlu0 %v1094
    %v1271 = vpop.xlane.xlu0 %1270
    %1272 = vadd.xlane.f32.xlu0 %v1095
    %v1273 = vpop.xlane.xlu0 %1272
    %1274 = vadd.xlane.f32.xlu0 %v1096
    %v1275 = vpop.xlane.xlu0 %1274
    %1276 = vadd.xlane.f32.xlu0 %v1097
    %v1277 = vpop.xlane.xlu0 %1276
    %1278 = vadd.xlane.f32.xlu0 %v1098
    %v1279 = vpop.xlane.xlu0 %1278
    %1280 = vadd.xlane.f32.xlu0 %v1099
    %v1281 = vpop.xlane.xlu0 %1280
    %1282 = vadd.xlane.f32.xlu0 %v1100
    %v1283 = vpop.xlane.xlu0 %1282
    %1284 = vadd.xlane.f32.xlu0 %v1101
    %v1285 = vpop.xlane.xlu0 %1284
    %1286 = vadd.xlane.f32.xlu0 %v1102
    %v1287 = vpop.xlane.xlu0 %1286
    %1288 = vadd.xlane.f32.xlu0 %v1103
    %v1289 = vpop.xlane.xlu0 %1288
    %1290 = vadd.xlane.f32.xlu0 %v1104
    %v1291 = vpop.xlane.xlu0 %1290
    %1292 = vadd.xlane.f32.xlu0 %v1105
    %v1293 = vpop.xlane.xlu0 %1292
    %1294 = vadd.xlane.f32.xlu0 %v1106
    %v1295 = vpop.xlane.xlu0 %1294
    %1296 = vadd.xlane.f32.xlu0 %v1107
    %v1297 = vpop.xlane.xlu0 %1296
    %1298 = vadd.xlane.f32.xlu0 %v1108
    %v1299 = vpop.xlane.xlu0 %1298
    %1300 = vadd.xlane.f32.xlu0 %v1109
    %v1301 = vpop.xlane.xlu0 %1300
    %1302 = vadd.xlane.f32.xlu0 %v1110
    %v1303 = vpop.xlane.xlu0 %1302
    %1304 = vadd.xlane.f32.xlu0 %v1111
    %v1305 = vpop.xlane.xlu0 %1304
    %1306 = vadd.xlane.f32.xlu0 %v1112
    %v1307 = vpop.xlane.xlu0 %1306
    %1308 = vadd.xlane.f32.xlu0 %v1113
    %v1309 = vpop.xlane.xlu0 %1308
    %1310 = vadd.xlane.f32.xlu0 %v1114
    %v1311 = vpop.xlane.xlu0 %1310
    %1312 = vadd.xlane.f32.xlu0 %v1115
    %v1313 = vpop.xlane.xlu0 %1312
    %1314 = vadd.xlane.f32.xlu0 %v1116
    %v1315 = vpop.xlane.xlu0 %1314
    %1316 = vadd.xlane.f32.xlu0 %v1117
    %v1317 = vpop.xlane.xlu0 %1316
    %1318 = vadd.xlane.f32.xlu0 %v1118
    %v1319 = vpop.xlane.xlu0 %1318
    %1320 = vadd.xlane.f32.xlu0 %v1119
    %v1321 = vpop.xlane.xlu0 %1320
    %1322 = vadd.xlane.f32.xlu0 %v1120
    %v1323 = vpop.xlane.xlu0 %1322
    %1324 = vadd.xlane.f32.xlu0 %v1121
    %v1325 = vpop.xlane.xlu0 %1324
    %1326 = vadd.xlane.f32.xlu0 %v1122
    %v1327 = vpop.xlane.xlu0 %1326
    %1328 = vadd.xlane.f32.xlu0 %v1123
    %v1329 = vpop.xlane.xlu0 %1328
    %1330 = vadd.xlane.f32.xlu0 %v1124
    %v1331 = vpop.xlane.xlu0 %1330
    %1332 = vadd.xlane.f32.xlu0 %v1125
    %v1333 = vpop.xlane.xlu0 %1332
    %1334 = vadd.xlane.f32.xlu0 %v1126
    %v1335 = vpop.xlane.xlu0 %1334
    %1336 = vadd.xlane.f32.xlu0 %v1127
    %v1337 = vpop.xlane.xlu0 %1336
    %1338 = vadd.xlane.f32.xlu0 %v1128
    %v1339 = vpop.xlane.xlu0 %1338
    %1340 = vadd.xlane.f32.xlu0 %v1129
    %v1341 = vpop.xlane.xlu0 %1340
    %1342 = vadd.xlane.f32.xlu0 %v1130
    %v1343 = vpop.xlane.xlu0 %1342
    %1344 = vadd.xlane.f32.xlu0 %v1131
    %v1345 = vpop.xlane.xlu0 %1344
    %1346 = vadd.xlane.f32.xlu0 %v1132
    %v1347 = vpop.xlane.xlu0 %1346
    %1348 = vadd.xlane.f32.xlu0 %v1133
    %v1349 = vpop.xlane.xlu0 %1348
    %1350 = vadd.xlane.f32.xlu0 %v1134
    %v1351 = vpop.xlane.xlu0 %1350
    %1352 = vadd.xlane.f32.xlu0 %v1135
    %v1353 = vpop.xlane.xlu0 %1352
    %1354 = vadd.xlane.f32.xlu0 %v1136
    %v1355 = vpop.xlane.xlu0 %1354
    %1356 = vadd.xlane.f32.xlu0 %v1137
    %v1357 = vpop.xlane.xlu0 %1356
    %1358 = vadd.xlane.f32.xlu0 %v1138
    %v1359 = vpop.xlane.xlu0 %1358
    %1360 = vadd.xlane.f32.xlu0 %v1139
    %v1361 = vpop.xlane.xlu0 %1360
    %1362 = vadd.xlane.f32.xlu0 %v1140
    %v1363 = vpop.xlane.xlu0 %1362
    %1364 = vadd.xlane.f32.xlu0 %v1141
    %v1365 = vpop.xlane.xlu0 %1364
    %1366 = vadd.xlane.f32.xlu0 %v1142
    %v1367 = vpop.xlane.xlu0 %1366
    %1368 = vadd.xlane.f32.xlu0 %v1143
    %v1369 = vpop.xlane.xlu0 %1368
    %1370 = vadd.xlane.f32.xlu0 %v1144
    %v1371 = vpop.xlane.xlu0 %1370
    %1372 = vadd.xlane.f32.xlu0 %v1145
    %v1373 = vpop.xlane.xlu0 %1372
    %1374 = vadd.xlane.f32.xlu0 %v1146
    %v1375 = vpop.xlane.xlu0 %1374
    %1376 = vadd.xlane.f32.xlu0 %v1147
    %v1377 = vpop.xlane.xlu0 %1376
    %1378 = vadd.xlane.f32.xlu0 %v1148
    %v1379 = vpop.xlane.xlu0 %1378
    %1380 = vadd.xlane.f32.xlu0 %v1149
    %v1381 = vpop.xlane.xlu0 %1380
    %1382 = vadd.xlane.f32.xlu0 %v1150
    %v1383 = vpop.xlane.xlu0 %1382
    %1384 = vadd.xlane.f32.xlu0 %v1151
    %v1385 = vpop.xlane.xlu0 %1384
    %1386 = vadd.xlane.f32.xlu0 %v1152
    %v1387 = vpop.xlane.xlu0 %1386
    %1388 = vadd.xlane.f32.xlu0 %v1153
    %v1389 = vpop.xlane.xlu0 %1388
    %1390 = vadd.xlane.f32.xlu0 %v1154
    %v1391 = vpop.xlane.xlu0 %1390
    %1392 = vadd.xlane.f32.xlu0 %v1155
    %v1393 = vpop.xlane.xlu0 %1392
    %1394 = vadd.xlane.f32.xlu0 %v1156
    %v1395 = vpop.xlane.xlu0 %1394
    %1396 = vadd.xlane.f32.xlu0 %v1157
    %v1397 = vpop.xlane.xlu0 %1396
    %1398 = vadd.xlane.f32.xlu0 %v1158
    %v1399 = vpop.xlane.xlu0 %1398
    %1400 = vadd.xlane.f32.xlu0 %v1159
    %v1401 = vpop.xlane.xlu0 %1400
    %1402 = vadd.xlane.f32.xlu0 %v1160
    %v1403 = vpop.xlane.xlu0 %1402
    %1404 = vadd.xlane.f32.xlu0 %v1161
    %v1405 = vpop.xlane.xlu0 %1404
    %1406 = vadd.xlane.f32.xlu0 %v1162
    %v1407 = vpop.xlane.xlu0 %1406
    %1408 = vadd.xlane.f32.xlu0 %v1163
    %v1409 = vpop.xlane.xlu0 %1408
    %1410 = vadd.xlane.f32.xlu0 %v1164
    %v1411 = vpop.xlane.xlu0 %1410
    %1412 = vadd.xlane.f32.xlu0 %v1165
    %v1413 = vpop.xlane.xlu0 %1412
    %1414 = vadd.xlane.f32.xlu0 %v1166
    %v1415 = vpop.xlane.xlu0 %1414
    %1416 = vadd.xlane.f32.xlu0 %v1167
    %v1417 = vpop.xlane.xlu0 %1416
    %1418 = vadd.xlane.f32.xlu0 %v1168
    %v1419 = vpop.xlane.xlu0 %1418
    %1420 = vadd.xlane.f32.xlu0 %v1169
    %v1421 = vpop.xlane.xlu0 %1420
    %1422 = vadd.xlane.f32.xlu0 %v1170
    %v1423 = vpop.xlane.xlu0 %1422
    %1424 = vadd.xlane.f32.xlu0 %v1171
    %v1425 = vpop.xlane.xlu0 %1424
    %1426 = vadd.xlane.f32.xlu0 %v1172
    %v1427 = vpop.xlane.xlu0 %1426
    %1428 = vadd.xlane.f32.xlu0 %v1173
    %v1429 = vpop.xlane.xlu0 %1428
    %1430 = vadd.xlane.f32.xlu0 %v81
    %v1431 = vpop.xlane.xlu0 %1430
    %v1432 = vmax.f32 %v1431, 1.0
    %v1434 = vperm.slane %v1432, 0
    %v1435 = vperm.slane %v1432, 1
    %v1436 = vperm.slane %v1432, 2
    %v1437 = vperm.slane %v1432, 3
    %v1438 = vperm.slane %v1432, 4
    %v1439 = vperm.slane %v1432, 5
    %v1440 = vperm.slane %v1432, 6
    %v1441 = vperm.slane %v1432, 7
    %v1450 = vrcp.pop %v1434
    %v1451 = vmul.f32 %v1434, %v1450
    %v1452 = vsub.f32 1.0, %v1451
    %v1453 = vmul.f32 %v1450, %v1452
    %v1454 = vadd.f32 %v1450, %v1453
    %vm1455 = vweird.f32 %v1434
    %vm1456 = vweird.f32 %v1450
    %vm1457 = vmor %vm1455, %vm1456
    %v1458 = vsel %vm1457, %v1450, %v1454
    %v1459 = vand.u32 2147483647, %v1434
    %vm1460 = vcmp.eq.f32.partialorder %v1459, 8.507059e+37
    %v1461 = vand.u32 %v1434, 2147483648
    %v1462 = vor.u32 1.1754944e-38, %v1461
    %v1463 = vsel %vm1460, %v1462, %v1458
    %v1464 = vmul.f32 %v1175, %v1463
    %v1465 = vmul.f32 %v1177, %v1463
    %v1466 = vmul.f32 %v1179, %v1463
    %v1467 = vmul.f32 %v1181, %v1463
    %v1468 = vmul.f32 %v1183, %v1463
    %v1469 = vmul.f32 %v1185, %v1463
    %v1470 = vmul.f32 %v1187, %v1463
    %v1471 = vmul.f32 %v1189, %v1463
    %v1472 = vmul.f32 %v1191, %v1463
    %v1473 = vmul.f32 %v1193, %v1463
    %v1474 = vmul.f32 %v1195, %v1463
    %v1475 = vmul.f32 %v1197, %v1463
    %v1476 = vmul.f32 %v1199, %v1463
    %v1477 = vmul.f32 %v1201, %v1463
    %v1478 = vmul.f32 %v1203, %v1463
    %v1479 = vmul.f32 %v1205, %v1463
    %v1480 = vrcp.pop %v1435
    %v1481 = vmul.f32 %v1435, %v1480
    %v1482 = vsub.f32 1.0, %v1481
    %v1483 = vmul.f32 %v1480, %v1482
    %v1484 = vadd.f32 %v1480, %v1483
    %vm1485 = vweird.f32 %v1435
    %vm1486 = vweird.f32 %v1480
    %vm1487 = vmor %vm1485, %vm1486
    %v1488 = vsel %vm1487, %v1480, %v1484
    %v1489 = vand.u32 2147483647, %v1435
    %vm1490 = vcmp.eq.f32.partialorder %v1489, 8.507059e+37
    %v1491 = vand.u32 %v1435, 2147483648
    %v1492 = vor.u32 1.1754944e-38, %v1491
    %v1493 = vsel %vm1490, %v1492, %v1488
    %v1494 = vmul.f32 %v1207, %v1493
    %v1495 = vmul.f32 %v1209, %v1493
    %v1496 = vmul.f32 %v1211, %v1493
    %v1497 = vmul.f32 %v1213, %v1493
    %v1498 = vmul.f32 %v1215, %v1493
    %v1499 = vmul.f32 %v1217, %v1493
    %v1500 = vmul.f32 %v1219, %v1493
    %v1501 = vmul.f32 %v1221, %v1493
    %v1502 = vmul.f32 %v1223, %v1493
    %v1503 = vmul.f32 %v1225, %v1493
    %v1504 = vmul.f32 %v1227, %v1493
    %v1505 = vmul.f32 %v1229, %v1493
    %v1506 = vmul.f32 %v1231, %v1493
    %v1507 = vmul.f32 %v1233, %v1493
    %v1508 = vmul.f32 %v1235, %v1493
    %v1509 = vmul.f32 %v1237, %v1493
    %v1510 = vrcp.pop %v1436
    %v1511 = vmul.f32 %v1436, %v1510
    %v1512 = vsub.f32 1.0, %v1511
    %v1513 = vmul.f32 %v1510, %v1512
    %v1514 = vadd.f32 %v1510, %v1513
    %vm1515 = vweird.f32 %v1436
    %vm1516 = vweird.f32 %v1510
    %vm1517 = vmor %vm1515, %vm1516
    %v1518 = vsel %vm1517, %v1510, %v1514
    %v1519 = vand.u32 2147483647, %v1436
    %vm1520 = vcmp.eq.f32.partialorder %v1519, 8.507059e+37
    %v1521 = vand.u32 %v1436, 2147483648
    %v1522 = vor.u32 1.1754944e-38, %v1521
    %v1523 = vsel %vm1520, %v1522, %v1518
    %v1524 = vmul.f32 %v1239, %v1523
    %v1525 = vmul.f32 %v1241, %v1523
    %v1526 = vmul.f32 %v1243, %v1523
    %v1527 = vmul.f32 %v1245, %v1523
    %v1528 = vmul.f32 %v1247, %v1523
    %v1529 = vmul.f32 %v1249, %v1523
    %v1530 = vmul.f32 %v1251, %v1523
    %v1531 = vmul.f32 %v1253, %v1523
    %v1532 = vmul.f32 %v1255, %v1523
    %v1533 = vmul.f32 %v1257, %v1523
    %v1534 = vmul.f32 %v1259, %v1523
    %v1535 = vmul.f32 %v1261, %v1523
    %v1536 = vmul.f32 %v1263, %v1523
    %v1537 = vmul.f32 %v1265, %v1523
    %v1538 = vmul.f32 %v1267, %v1523
    %v1539 = vmul.f32 %v1269, %v1523
    %v1540 = vrcp.pop %v1437
    %v1541 = vmul.f32 %v1437, %v1540
    %v1542 = vsub.f32 1.0, %v1541
    %v1543 = vmul.f32 %v1540, %v1542
    %v1544 = vadd.f32 %v1540, %v1543
    %vm1545 = vweird.f32 %v1437
    %vm1546 = vweird.f32 %v1540
    %vm1547 = vmor %vm1545, %vm1546
    %v1548 = vsel %vm1547, %v1540, %v1544
    %v1549 = vand.u32 2147483647, %v1437
    %vm1550 = vcmp.eq.f32.partialorder %v1549, 8.507059e+37
    %v1551 = vand.u32 %v1437, 2147483648
    %v1552 = vor.u32 1.1754944e-38, %v1551
    %v1553 = vsel %vm1550, %v1552, %v1548
    %v1554 = vmul.f32 %v1271, %v1553
    %v1555 = vmul.f32 %v1273, %v1553
    %v1556 = vmul.f32 %v1275, %v1553
    %v1557 = vmul.f32 %v1277, %v1553
    %v1558 = vmul.f32 %v1279, %v1553
    %v1559 = vmul.f32 %v1281, %v1553
    %v1560 = vmul.f32 %v1283, %v1553
    %v1561 = vmul.f32 %v1285, %v1553
    %v1562 = vmul.f32 %v1287, %v1553
    %v1563 = vmul.f32 %v1289, %v1553
    %v1564 = vmul.f32 %v1291, %v1553
    %v1565 = vmul.f32 %v1293, %v1553
    %v1566 = vmul.f32 %v1295, %v1553
    %v1567 = vmul.f32 %v1297, %v1553
    %v1568 = vmul.f32 %v1299, %v1553
    %v1569 = vmul.f32 %v1301, %v1553
    %v1570 = vrcp.pop %v1438
    %v1571 = vmul.f32 %v1438, %v1570
    %v1572 = vsub.f32 1.0, %v1571
    %v1573 = vmul.f32 %v1570, %v1572
    %v1574 = vadd.f32 %v1570, %v1573
    %vm1575 = vweird.f32 %v1438
    %vm1576 = vweird.f32 %v1570
    %vm1577 = vmor %vm1575, %vm1576
    %v1578 = vsel %vm1577, %v1570, %v1574
    %v1579 = vand.u32 2147483647, %v1438
    %vm1580 = vcmp.eq.f32.partialorder %v1579, 8.507059e+37
    %v1581 = vand.u32 %v1438, 2147483648
    %v1582 = vor.u32 1.1754944e-38, %v1581
    %v1583 = vsel %vm1580, %v1582, %v1578
    %v1584 = vmul.f32 %v1303, %v1583
    %v1585 = vmul.f32 %v1305, %v1583
    %v1586 = vmul.f32 %v1307, %v1583
    %v1587 = vmul.f32 %v1309, %v1583
    %v1588 = vmul.f32 %v1311, %v1583
    %v1589 = vmul.f32 %v1313, %v1583
    %v1590 = vmul.f32 %v1315, %v1583
    %v1591 = vmul.f32 %v1317, %v1583
    %v1592 = vmul.f32 %v1319, %v1583
    %v1593 = vmul.f32 %v1321, %v1583
    %v1594 = vmul.f32 %v1323, %v1583
    %v1595 = vmul.f32 %v1325, %v1583
    %v1596 = vmul.f32 %v1327, %v1583
    %v1597 = vmul.f32 %v1329, %v1583
    %v1598 = vmul.f32 %v1331, %v1583
    %v1599 = vmul.f32 %v1333, %v1583
    %v1600 = vrcp.pop %v1439
    %v1601 = vmul.f32 %v1439, %v1600
    %v1602 = vsub.f32 1.0, %v1601
    %v1603 = vmul.f32 %v1600, %v1602
    %v1604 = vadd.f32 %v1600, %v1603
    %vm1605 = vweird.f32 %v1439
    %vm1606 = vweird.f32 %v1600
    %vm1607 = vmor %vm1605, %vm1606
    %v1608 = vsel %vm1607, %v1600, %v1604
    %v1609 = vand.u32 2147483647, %v1439
    %vm1610 = vcmp.eq.f32.partialorder %v1609, 8.507059e+37
    %v1611 = vand.u32 %v1439, 2147483648
    %v1612 = vor.u32 1.1754944e-38, %v1611
    %v1613 = vsel %vm1610, %v1612, %v1608
    %v1614 = vmul.f32 %v1335, %v1613
    %v1615 = vmul.f32 %v1337, %v1613
    %v1616 = vmul.f32 %v1339, %v1613
    %v1617 = vmul.f32 %v1341, %v1613
    %v1618 = vmul.f32 %v1343, %v1613
    %v1619 = vmul.f32 %v1345, %v1613
    %v1620 = vmul.f32 %v1347, %v1613
    %v1621 = vmul.f32 %v1349, %v1613
    %v1622 = vmul.f32 %v1351, %v1613
    %v1623 = vmul.f32 %v1353, %v1613
    %v1624 = vmul.f32 %v1355, %v1613
    %v1625 = vmul.f32 %v1357, %v1613
    %v1626 = vmul.f32 %v1359, %v1613
    %v1627 = vmul.f32 %v1361, %v1613
    %v1628 = vmul.f32 %v1363, %v1613
    %v1629 = vmul.f32 %v1365, %v1613
    %v1630 = vrcp.pop %v1440
    %v1631 = vmul.f32 %v1440, %v1630
    %v1632 = vsub.f32 1.0, %v1631
    %v1633 = vmul.f32 %v1630, %v1632
    %v1634 = vadd.f32 %v1630, %v1633
    %vm1635 = vweird.f32 %v1440
    %vm1636 = vweird.f32 %v1630
    %vm1637 = vmor %vm1635, %vm1636
    %v1638 = vsel %vm1637, %v1630, %v1634
    %v1639 = vand.u32 2147483647, %v1440
    %vm1640 = vcmp.eq.f32.partialorder %v1639, 8.507059e+37
    %v1641 = vand.u32 %v1440, 2147483648
    %v1642 = vor.u32 1.1754944e-38, %v1641
    %v1643 = vsel %vm1640, %v1642, %v1638
    %v1644 = vmul.f32 %v1367, %v1643
    %v1645 = vmul.f32 %v1369, %v1643
    %v1646 = vmul.f32 %v1371, %v1643
    %v1647 = vmul.f32 %v1373, %v1643
    %v1648 = vmul.f32 %v1375, %v1643
    %v1649 = vmul.f32 %v1377, %v1643
    %v1650 = vmul.f32 %v1379, %v1643
    %v1651 = vmul.f32 %v1381, %v1643
    %v1652 = vmul.f32 %v1383, %v1643
    %v1653 = vmul.f32 %v1385, %v1643
    %v1654 = vmul.f32 %v1387, %v1643
    %v1655 = vmul.f32 %v1389, %v1643
    %v1656 = vmul.f32 %v1391, %v1643
    %v1657 = vmul.f32 %v1393, %v1643
    %v1658 = vmul.f32 %v1395, %v1643
    %v1659 = vmul.f32 %v1397, %v1643
    %v1660 = vrcp.pop %v1441
    %v1661 = vmul.f32 %v1441, %v1660
    %v1662 = vsub.f32 1.0, %v1661
    %v1663 = vmul.f32 %v1660, %v1662
    %v1664 = vadd.f32 %v1660, %v1663
    %vm1665 = vweird.f32 %v1441
    %vm1666 = vweird.f32 %v1660
    %vm1667 = vmor %vm1665, %vm1666
    %v1668 = vsel %vm1667, %v1660, %v1664
    %v1669 = vand.u32 2147483647, %v1441
    %vm1670 = vcmp.eq.f32.partialorder %v1669, 8.507059e+37
    %v1671 = vand.u32 %v1441, 2147483648
    %v1672 = vor.u32 1.1754944e-38, %v1671
    %v1673 = vsel %vm1670, %v1672, %v1668
    %v1674 = vmul.f32 %v1399, %v1673
    %v1675 = vmul.f32 %v1401, %v1673
    %v1676 = vmul.f32 %v1403, %v1673
    %v1677 = vmul.f32 %v1405, %v1673
    %v1678 = vmul.f32 %v1407, %v1673
    %v1679 = vmul.f32 %v1409, %v1673
    %v1680 = vmul.f32 %v1411, %v1673
    %v1681 = vmul.f32 %v1413, %v1673
    %v1682 = vmul.f32 %v1415, %v1673
    %v1683 = vmul.f32 %v1417, %v1673
    %v1684 = vmul.f32 %v1419, %v1673
    %v1685 = vmul.f32 %v1421, %v1673
    %v1686 = vmul.f32 %v1423, %v1673
    %v1687 = vmul.f32 %v1425, %v1673
    %v1688 = vmul.f32 %v1427, %v1673
    %v1689 = vmul.f32 %v1429, %v1673
    loop: start=0, step=1, limit=7
    $region34: #{tpu_custom_call.1} parent=1 // loop_pre_header
      _
    $region35: #{tpu_custom_call.1} parent=1 // loop_header
      %s1691 = sphi 0, %s1695
      %p1692 = scmp.ge.s32.totalorder %s1691, 7
      %v1696 = vphi 0.0, %v2517
      %v1697 = vphi 3.0, %v2516
    $region36: #{tpu_custom_call.1} parent=1 // loop_header_branch
      %1694 = sbr.rel (%p1692) target = $region40
    $region37: #{tpu_custom_call.1} parent=1 // loop_body
      %s1698 = smul.u32 %s1691, 8
      %s1699 = scalar_lea.vmem [#allocation9], %s1698
      %v1700 = vld [vmem:[%s1699] sm:$0xff]
      %1829 = vset.pattern.permute.xlu0 0
      %1830 = vperm.xlu0 %1829, %v1464
      %v1831 = vpop.permute.xlu0 %1830
      %1832 = vset.pattern.permute.xlu0 0
      %1833 = vperm.xlu0 %1832, %v1465
      %v1834 = vpop.permute.xlu0 %1833
      %1835 = vset.pattern.permute.xlu0 0
      %1836 = vperm.xlu0 %1835, %v1466
      %v1837 = vpop.permute.xlu0 %1836
      %1838 = vset.pattern.permute.xlu0 0
      %1839 = vperm.xlu0 %1838, %v1467
      %v1840 = vpop.permute.xlu0 %1839
      %1841 = vset.pattern.permute.xlu0 0
      %1842 = vperm.xlu0 %1841, %v1468
      %v1843 = vpop.permute.xlu0 %1842
      %1844 = vset.pattern.permute.xlu0 0
      %1845 = vperm.xlu0 %1844, %v1469
      %v1846 = vpop.permute.xlu0 %1845
      %1847 = vset.pattern.permute.xlu0 0
      %1848 = vperm.xlu0 %1847, %v1470
      %v1849 = vpop.permute.xlu0 %1848
      %1850 = vset.pattern.permute.xlu0 0
      %1851 = vperm.xlu0 %1850, %v1471
      %v1852 = vpop.permute.xlu0 %1851
      %1853 = vset.pattern.permute.xlu0 0
      %1854 = vperm.xlu0 %1853, %v1472
      %v1855 = vpop.permute.xlu0 %1854
      %1856 = vset.pattern.permute.xlu0 0
      %1857 = vperm.xlu0 %1856, %v1473
      %v1858 = vpop.permute.xlu0 %1857
      %1859 = vset.pattern.permute.xlu0 0
      %1860 = vperm.xlu0 %1859, %v1474
      %v1861 = vpop.permute.xlu0 %1860
      %1862 = vset.pattern.permute.xlu0 0
      %1863 = vperm.xlu0 %1862, %v1475
      %v1864 = vpop.permute.xlu0 %1863
      %1865 = vset.pattern.permute.xlu0 0
      %1866 = vperm.xlu0 %1865, %v1476
      %v1867 = vpop.permute.xlu0 %1866
      %1868 = vset.pattern.permute.xlu0 0
      %1869 = vperm.xlu0 %1868, %v1477
      %v1870 = vpop.permute.xlu0 %1869
      %1871 = vset.pattern.permute.xlu0 0
      %1872 = vperm.xlu0 %1871, %v1478
      %v1873 = vpop.permute.xlu0 %1872
      %1874 = vset.pattern.permute.xlu0 0
      %1875 = vperm.xlu0 %1874, %v1479
      %v1876 = vpop.permute.xlu0 %1875
      %1877 = vset.pattern.permute.xlu0 0
      %1878 = vperm.xlu0 %1877, %v1494
      %v1879 = vpop.permute.xlu0 %1878
      %1880 = vset.pattern.permute.xlu0 0
      %1881 = vperm.xlu0 %1880, %v1495
      %v1882 = vpop.permute.xlu0 %1881
      %1883 = vset.pattern.permute.xlu0 0
      %1884 = vperm.xlu0 %1883, %v1496
      %v1885 = vpop.permute.xlu0 %1884
      %1886 = vset.pattern.permute.xlu0 0
      %1887 = vperm.xlu0 %1886, %v1497
      %v1888 = vpop.permute.xlu0 %1887
      %1889 = vset.pattern.permute.xlu0 0
      %1890 = vperm.xlu0 %1889, %v1498
      %v1891 = vpop.permute.xlu0 %1890
      %1892 = vset.pattern.permute.xlu0 0
      %1893 = vperm.xlu0 %1892, %v1499
      %v1894 = vpop.permute.xlu0 %1893
      %1895 = vset.pattern.permute.xlu0 0
      %1896 = vperm.xlu0 %1895, %v1500
      %v1897 = vpop.permute.xlu0 %1896
      %1898 = vset.pattern.permute.xlu0 0
      %1899 = vperm.xlu0 %1898, %v1501
      %v1900 = vpop.permute.xlu0 %1899
      %1901 = vset.pattern.permute.xlu0 0
      %1902 = vperm.xlu0 %1901, %v1502
      %v1903 = vpop.permute.xlu0 %1902
      %1904 = vset.pattern.permute.xlu0 0
      %1905 = vperm.xlu0 %1904, %v1503
      %v1906 = vpop.permute.xlu0 %1905
      %1907 = vset.pattern.permute.xlu0 0
      %1908 = vperm.xlu0 %1907, %v1504
      %v1909 = vpop.permute.xlu0 %1908
      %1910 = vset.pattern.permute.xlu0 0
      %1911 = vperm.xlu0 %1910, %v1505
      %v1912 = vpop.permute.xlu0 %1911
      %1913 = vset.pattern.permute.xlu0 0
      %1914 = vperm.xlu0 %1913, %v1506
      %v1915 = vpop.permute.xlu0 %1914
      %1916 = vset.pattern.permute.xlu0 0
      %1917 = vperm.xlu0 %1916, %v1507
      %v1918 = vpop.permute.xlu0 %1917
      %1919 = vset.pattern.permute.xlu0 0
      %1920 = vperm.xlu0 %1919, %v1508
      %v1921 = vpop.permute.xlu0 %1920
      %1922 = vset.pattern.permute.xlu0 0
      %1923 = vperm.xlu0 %1922, %v1509
      %v1924 = vpop.permute.xlu0 %1923
      %1925 = vset.pattern.permute.xlu0 0
      %1926 = vperm.xlu0 %1925, %v1524
      %v1927 = vpop.permute.xlu0 %1926
      %1928 = vset.pattern.permute.xlu0 0
      %1929 = vperm.xlu0 %1928, %v1525
      %v1930 = vpop.permute.xlu0 %1929
      %1931 = vset.pattern.permute.xlu0 0
      %1932 = vperm.xlu0 %1931, %v1526
      %v1933 = vpop.permute.xlu0 %1932
      %1934 = vset.pattern.permute.xlu0 0
      %1935 = vperm.xlu0 %1934, %v1527
      %v1936 = vpop.permute.xlu0 %1935
      %1937 = vset.pattern.permute.xlu0 0
      %1938 = vperm.xlu0 %1937, %v1528
      %v1939 = vpop.permute.xlu0 %1938
      %1940 = vset.pattern.permute.xlu0 0
      %1941 = vperm.xlu0 %1940, %v1529
      %v1942 = vpop.permute.xlu0 %1941
      %1943 = vset.pattern.permute.xlu0 0
      %1944 = vperm.xlu0 %1943, %v1530
      %v1945 = vpop.permute.xlu0 %1944
      %1946 = vset.pattern.permute.xlu0 0
      %1947 = vperm.xlu0 %1946, %v1531
      %v1948 = vpop.permute.xlu0 %1947
      %1949 = vset.pattern.permute.xlu0 0
      %1950 = vperm.xlu0 %1949, %v1532
      %v1951 = vpop.permute.xlu0 %1950
      %1952 = vset.pattern.permute.xlu0 0
      %1953 = vperm.xlu0 %1952, %v1533
      %v1954 = vpop.permute.xlu0 %1953
      %1955 = vset.pattern.permute.xlu0 0
      %1956 = vperm.xlu0 %1955, %v1534
      %v1957 = vpop.permute.xlu0 %1956
      %1958 = vset.pattern.permute.xlu0 0
      %1959 = vperm.xlu0 %1958, %v1535
      %v1960 = vpop.permute.xlu0 %1959
      %1961 = vset.pattern.permute.xlu0 0
      %1962 = vperm.xlu0 %1961, %v1536
      %v1963 = vpop.permute.xlu0 %1962
      %1964 = vset.pattern.permute.xlu0 0
      %1965 = vperm.xlu0 %1964, %v1537
      %v1966 = vpop.permute.xlu0 %1965
      %1967 = vset.pattern.permute.xlu0 0
      %1968 = vperm.xlu0 %1967, %v1538
      %v1969 = vpop.permute.xlu0 %1968
      %1970 = vset.pattern.permute.xlu0 0
      %1971 = vperm.xlu0 %1970, %v1539
      %v1972 = vpop.permute.xlu0 %1971
      %1973 = vset.pattern.permute.xlu0 0
      %1974 = vperm.xlu0 %1973, %v1554
      %v1975 = vpop.permute.xlu0 %1974
      %1976 = vset.pattern.permute.xlu0 0
      %1977 = vperm.xlu0 %1976, %v1555
      %v1978 = vpop.permute.xlu0 %1977
      %1979 = vset.pattern.permute.xlu0 0
      %1980 = vperm.xlu0 %1979, %v1556
      %v1981 = vpop.permute.xlu0 %1980
      %1982 = vset.pattern.permute.xlu0 0
      %1983 = vperm.xlu0 %1982, %v1557
      %v1984 = vpop.permute.xlu0 %1983
      %1985 = vset.pattern.permute.xlu0 0
      %1986 = vperm.xlu0 %1985, %v1558
      %v1987 = vpop.permute.xlu0 %1986
      %1988 = vset.pattern.permute.xlu0 0
      %1989 = vperm.xlu0 %1988, %v1559
      %v1990 = vpop.permute.xlu0 %1989
      %1991 = vset.pattern.permute.xlu0 0
      %1992 = vperm.xlu0 %1991, %v1560
      %v1993 = vpop.permute.xlu0 %1992
      %1994 = vset.pattern.permute.xlu0 0
      %1995 = vperm.xlu0 %1994, %v1561
      %v1996 = vpop.permute.xlu0 %1995
      %1997 = vset.pattern.permute.xlu0 0
      %1998 = vperm.xlu0 %1997, %v1562
      %v1999 = vpop.permute.xlu0 %1998
      %2000 = vset.pattern.permute.xlu0 0
      %2001 = vperm.xlu0 %2000, %v1563
      %v2002 = vpop.permute.xlu0 %2001
      %2003 = vset.pattern.permute.xlu0 0
      %2004 = vperm.xlu0 %2003, %v1564
      %v2005 = vpop.permute.xlu0 %2004
      %2006 = vset.pattern.permute.xlu0 0
      %2007 = vperm.xlu0 %2006, %v1565
      %v2008 = vpop.permute.xlu0 %2007
      %2009 = vset.pattern.permute.xlu0 0
      %2010 = vperm.xlu0 %2009, %v1566
      %v2011 = vpop.permute.xlu0 %2010
      %2012 = vset.pattern.permute.xlu0 0
      %2013 = vperm.xlu0 %2012, %v1567
      %v2014 = vpop.permute.xlu0 %2013
      %2015 = vset.pattern.permute.xlu0 0
      %2016 = vperm.xlu0 %2015, %v1568
      %v2017 = vpop.permute.xlu0 %2016
      %2018 = vset.pattern.permute.xlu0 0
      %2019 = vperm.xlu0 %2018, %v1569
      %v2020 = vpop.permute.xlu0 %2019
      %2021 = vset.pattern.permute.xlu0 0
      %2022 = vperm.xlu0 %2021, %v1584
      %v2023 = vpop.permute.xlu0 %2022
      %2024 = vset.pattern.permute.xlu0 0
      %2025 = vperm.xlu0 %2024, %v1585
      %v2026 = vpop.permute.xlu0 %2025
      %2027 = vset.pattern.permute.xlu0 0
      %2028 = vperm.xlu0 %2027, %v1586
      %v2029 = vpop.permute.xlu0 %2028
      %2030 = vset.pattern.permute.xlu0 0
      %2031 = vperm.xlu0 %2030, %v1587
      %v2032 = vpop.permute.xlu0 %2031
      %2033 = vset.pattern.permute.xlu0 0
      %2034 = vperm.xlu0 %2033, %v1588
      %v2035 = vpop.permute.xlu0 %2034
      %2036 = vset.pattern.permute.xlu0 0
      %2037 = vperm.xlu0 %2036, %v1589
      %v2038 = vpop.permute.xlu0 %2037
      %2039 = vset.pattern.permute.xlu0 0
      %2040 = vperm.xlu0 %2039, %v1590
      %v2041 = vpop.permute.xlu0 %2040
      %2042 = vset.pattern.permute.xlu0 0
      %2043 = vperm.xlu0 %2042, %v1591
      %v2044 = vpop.permute.xlu0 %2043
      %2045 = vset.pattern.permute.xlu0 0
      %2046 = vperm.xlu0 %2045, %v1592
      %v2047 = vpop.permute.xlu0 %2046
      %2048 = vset.pattern.permute.xlu0 0
      %2049 = vperm.xlu0 %2048, %v1593
      %v2050 = vpop.permute.xlu0 %2049
      %2051 = vset.pattern.permute.xlu0 0
      %2052 = vperm.xlu0 %2051, %v1594
      %v2053 = vpop.permute.xlu0 %2052
      %2054 = vset.pattern.permute.xlu0 0
      %2055 = vperm.xlu0 %2054, %v1595
      %v2056 = vpop.permute.xlu0 %2055
      %2057 = vset.pattern.permute.xlu0 0
      %2058 = vperm.xlu0 %2057, %v1596
      %v2059 = vpop.permute.xlu0 %2058
      %2060 = vset.pattern.permute.xlu0 0
      %2061 = vperm.xlu0 %2060, %v1597
      %v2062 = vpop.permute.xlu0 %2061
      %2063 = vset.pattern.permute.xlu0 0
      %2064 = vperm.xlu0 %2063, %v1598
      %v2065 = vpop.permute.xlu0 %2064
      %2066 = vset.pattern.permute.xlu0 0
      %2067 = vperm.xlu0 %2066, %v1599
      %v2068 = vpop.permute.xlu0 %2067
      %2069 = vset.pattern.permute.xlu0 0
      %2070 = vperm.xlu0 %2069, %v1614
      %v2071 = vpop.permute.xlu0 %2070
      %2072 = vset.pattern.permute.xlu0 0
      %2073 = vperm.xlu0 %2072, %v1615
      %v2074 = vpop.permute.xlu0 %2073
      %2075 = vset.pattern.permute.xlu0 0
      %2076 = vperm.xlu0 %2075, %v1616
      %v2077 = vpop.permute.xlu0 %2076
      %2078 = vset.pattern.permute.xlu0 0
      %2079 = vperm.xlu0 %2078, %v1617
      %v2080 = vpop.permute.xlu0 %2079
      %2081 = vset.pattern.permute.xlu0 0
      %2082 = vperm.xlu0 %2081, %v1618
      %v2083 = vpop.permute.xlu0 %2082
      %2084 = vset.pattern.permute.xlu0 0
      %2085 = vperm.xlu0 %2084, %v1619
      %v2086 = vpop.permute.xlu0 %2085
      %2087 = vset.pattern.permute.xlu0 0
      %2088 = vperm.xlu0 %2087, %v1620
      %v2089 = vpop.permute.xlu0 %2088
      %2090 = vset.pattern.permute.xlu0 0
      %2091 = vperm.xlu0 %2090, %v1621
      %v2092 = vpop.permute.xlu0 %2091
      %2093 = vset.pattern.permute.xlu0 0
      %2094 = vperm.xlu0 %2093, %v1622
      %v2095 = vpop.permute.xlu0 %2094
      %2096 = vset.pattern.permute.xlu0 0
      %2097 = vperm.xlu0 %2096, %v1623
      %v2098 = vpop.permute.xlu0 %2097
      %2099 = vset.pattern.permute.xlu0 0
      %2100 = vperm.xlu0 %2099, %v1624
      %v2101 = vpop.permute.xlu0 %2100
      %2102 = vset.pattern.permute.xlu0 0
      %2103 = vperm.xlu0 %2102, %v1625
      %v2104 = vpop.permute.xlu0 %2103
      %2105 = vset.pattern.permute.xlu0 0
      %2106 = vperm.xlu0 %2105, %v1626
      %v2107 = vpop.permute.xlu0 %2106
      %2108 = vset.pattern.permute.xlu0 0
      %2109 = vperm.xlu0 %2108, %v1627
      %v2110 = vpop.permute.xlu0 %2109
      %2111 = vset.pattern.permute.xlu0 0
      %2112 = vperm.xlu0 %2111, %v1628
      %v2113 = vpop.permute.xlu0 %2112
      %2114 = vset.pattern.permute.xlu0 0
      %2115 = vperm.xlu0 %2114, %v1629
      %v2116 = vpop.permute.xlu0 %2115
      %2117 = vset.pattern.permute.xlu0 0
      %2118 = vperm.xlu0 %2117, %v1644
      %v2119 = vpop.permute.xlu0 %2118
      %2120 = vset.pattern.permute.xlu0 0
      %2121 = vperm.xlu0 %2120, %v1645
      %v2122 = vpop.permute.xlu0 %2121
      %2123 = vset.pattern.permute.xlu0 0
      %2124 = vperm.xlu0 %2123, %v1646
      %v2125 = vpop.permute.xlu0 %2124
      %2126 = vset.pattern.permute.xlu0 0
      %2127 = vperm.xlu0 %2126, %v1647
      %v2128 = vpop.permute.xlu0 %2127
      %2129 = vset.pattern.permute.xlu0 0
      %2130 = vperm.xlu0 %2129, %v1648
      %v2131 = vpop.permute.xlu0 %2130
      %2132 = vset.pattern.permute.xlu0 0
      %2133 = vperm.xlu0 %2132, %v1649
      %v2134 = vpop.permute.xlu0 %2133
      %2135 = vset.pattern.permute.xlu0 0
      %2136 = vperm.xlu0 %2135, %v1650
      %v2137 = vpop.permute.xlu0 %2136
      %2138 = vset.pattern.permute.xlu0 0
      %2139 = vperm.xlu0 %2138, %v1651
      %v2140 = vpop.permute.xlu0 %2139
      %2141 = vset.pattern.permute.xlu0 0
      %2142 = vperm.xlu0 %2141, %v1652
      %v2143 = vpop.permute.xlu0 %2142
      %2144 = vset.pattern.permute.xlu0 0
      %2145 = vperm.xlu0 %2144, %v1653
      %v2146 = vpop.permute.xlu0 %2145
      %2147 = vset.pattern.permute.xlu0 0
      %2148 = vperm.xlu0 %2147, %v1654
      %v2149 = vpop.permute.xlu0 %2148
      %2150 = vset.pattern.permute.xlu0 0
      %2151 = vperm.xlu0 %2150, %v1655
      %v2152 = vpop.permute.xlu0 %2151
      %2153 = vset.pattern.permute.xlu0 0
      %2154 = vperm.xlu0 %2153, %v1656
      %v2155 = vpop.permute.xlu0 %2154
      %2156 = vset.pattern.permute.xlu0 0
      %2157 = vperm.xlu0 %2156, %v1657
      %v2158 = vpop.permute.xlu0 %2157
      %2159 = vset.pattern.permute.xlu0 0
      %2160 = vperm.xlu0 %2159, %v1658
      %v2161 = vpop.permute.xlu0 %2160
      %2162 = vset.pattern.permute.xlu0 0
      %2163 = vperm.xlu0 %2162, %v1659
      %v2164 = vpop.permute.xlu0 %2163
      %2165 = vset.pattern.permute.xlu0 0
      %2166 = vperm.xlu0 %2165, %v1674
      %v2167 = vpop.permute.xlu0 %2166
      %2168 = vset.pattern.permute.xlu0 0
      %2169 = vperm.xlu0 %2168, %v1675
      %v2170 = vpop.permute.xlu0 %2169
      %2171 = vset.pattern.permute.xlu0 0
      %2172 = vperm.xlu0 %2171, %v1676
      %v2173 = vpop.permute.xlu0 %2172
      %2174 = vset.pattern.permute.xlu0 0
      %2175 = vperm.xlu0 %2174, %v1677
      %v2176 = vpop.permute.xlu0 %2175
      %2177 = vset.pattern.permute.xlu0 0
      %2178 = vperm.xlu0 %2177, %v1678
      %v2179 = vpop.permute.xlu0 %2178
      %2180 = vset.pattern.permute.xlu0 0
      %2181 = vperm.xlu0 %2180, %v1679
      %v2182 = vpop.permute.xlu0 %2181
      %2183 = vset.pattern.permute.xlu0 0
      %2184 = vperm.xlu0 %2183, %v1680
      %v2185 = vpop.permute.xlu0 %2184
      %2186 = vset.pattern.permute.xlu0 0
      %2187 = vperm.xlu0 %2186, %v1681
      %v2188 = vpop.permute.xlu0 %2187
      %2189 = vset.pattern.permute.xlu0 0
      %2190 = vperm.xlu0 %2189, %v1682
      %v2191 = vpop.permute.xlu0 %2190
      %2192 = vset.pattern.permute.xlu0 0
      %2193 = vperm.xlu0 %2192, %v1683
      %v2194 = vpop.permute.xlu0 %2193
      %2195 = vset.pattern.permute.xlu0 0
      %2196 = vperm.xlu0 %2195, %v1684
      %v2197 = vpop.permute.xlu0 %2196
      %2198 = vset.pattern.permute.xlu0 0
      %2199 = vperm.xlu0 %2198, %v1685
      %v2200 = vpop.permute.xlu0 %2199
      %2201 = vset.pattern.permute.xlu0 0
      %2202 = vperm.xlu0 %2201, %v1686
      %v2203 = vpop.permute.xlu0 %2202
      %2204 = vset.pattern.permute.xlu0 0
      %2205 = vperm.xlu0 %2204, %v1687
      %v2206 = vpop.permute.xlu0 %2205
      %2207 = vset.pattern.permute.xlu0 0
      %2208 = vperm.xlu0 %2207, %v1688
      %v2209 = vpop.permute.xlu0 %2208
      %2210 = vset.pattern.permute.xlu0 0
      %2211 = vperm.xlu0 %2210, %v1689
      %v2212 = vpop.permute.xlu0 %2211
      %v2213 = vlaneseq
      %v2214 = vand.u32 %v2213, 127
      %v2215 = vperm.slane %v1831, %v2214
      %v2216 = vadd.s32 %v2214, 4294967288
      %v2217 = vperm.slane %v1834, %v2216
      %vm2218 = vcmask 130112
      %v2219 = vsel %vm2218, %v2217, %v2215
      %v2220 = vadd.s32 %v2214, 4294967280
      %v2221 = vperm.slane %v1837, %v2220
      %vm2222 = vcmask 195712
      %v2223 = vsel %vm2222, %v2221, %v2219
      %v2224 = vadd.s32 %v2214, 4294967272
      %v2225 = vperm.slane %v1840, %v2224
      %vm2226 = vcmask 261312
      %v2227 = vsel %vm2226, %v2225, %v2223
      %v2228 = vadd.s32 %v2214, 4294967264
      %v2229 = vperm.slane %v1843, %v2228
      %vm2230 = vcmask 326912
      %v2231 = vsel %vm2230, %v2229, %v2227
      %v2232 = vadd.s32 %v2214, 4294967256
      %v2233 = vperm.slane %v1846, %v2232
      %vm2234 = vcmask 392512
      %v2235 = vsel %vm2234, %v2233, %v2231
      %v2236 = vadd.s32 %v2214, 4294967248
      %v2237 = vperm.slane %v1849, %v2236
      %vm2238 = vcmask 458112
      %v2239 = vsel %vm2238, %v2237, %v2235
      %v2240 = vadd.s32 %v2214, 4294967240
      %v2241 = vperm.slane %v1852, %v2240
      %vm2242 = vcmask 523712
      %v2243 = vsel %vm2242, %v2241, %v2239
      %v2244 = vadd.s32 %v2214, 4294967232
      %v2245 = vperm.slane %v1855, %v2244
      %vm2246 = vcmask 589312
      %v2247 = vsel %vm2246, %v2245, %v2243
      %v2248 = vadd.s32 %v2214, 4294967224
      %v2249 = vperm.slane %v1858, %v2248
      %vm2250 = vcmask 654912
      %v2251 = vsel %vm2250, %v2249, %v2247
      %v2252 = vadd.s32 %v2214, 4294967216
      %v2253 = vperm.slane %v1861, %v2252
      %vm2254 = vcmask 720512
      %v2255 = vsel %vm2254, %v2253, %v2251
      %v2256 = vadd.s32 %v2214, 4294967208
      %v2257 = vperm.slane %v1864, %v2256
      %vm2258 = vcmask 786112
      %v2259 = vsel %vm2258, %v2257, %v2255
      %v2260 = vadd.s32 %v2214, 4294967200
      %v2261 = vperm.slane %v1867, %v2260
      %vm2262 = vcmask 851712
      %v2263 = vsel %vm2262, %v2261, %v2259
      %v2264 = vadd.s32 %v2214, 4294967192
      %v2265 = vperm.slane %v1870, %v2264
      %vm2266 = vcmask 917312
      %v2267 = vsel %vm2266, %v2265, %v2263
      %v2268 = vadd.s32 %v2214, 4294967184
      %v2269 = vperm.slane %v1873, %v2268
      %vm2270 = vcmask 982912
      %v2271 = vsel %vm2270, %v2269, %v2267
      %v2272 = vadd.s32 %v2214, 4294967176
      %v2273 = vperm.slane %v1876, %v2272
      %vm2274 = vcmask 1048512
      %v2275 = vsel %vm2274, %v2273, %v2271
      %v2276 = vperm.slane %v1879, %v2214
      %v2277 = vperm.slane %v1882, %v2216
      %v2278 = vsel %vm2218, %v2277, %v2276
      %v2279 = vperm.slane %v1885, %v2220
      %v2280 = vsel %vm2222, %v2279, %v2278
      %v2281 = vperm.slane %v1888, %v2224
      %v2282 = vsel %vm2226, %v2281, %v2280
      %v2283 = vperm.slane %v1891, %v2228
      %v2284 = vsel %vm2230, %v2283, %v2282
      %v2285 = vperm.slane %v1894, %v2232
      %v2286 = vsel %vm2234, %v2285, %v2284
      %v2287 = vperm.slane %v1897, %v2236
      %v2288 = vsel %vm2238, %v2287, %v2286
      %v2289 = vperm.slane %v1900, %v2240
      %v2290 = vsel %vm2242, %v2289, %v2288
      %v2291 = vperm.slane %v1903, %v2244
      %v2292 = vsel %vm2246, %v2291, %v2290
      %v2293 = vperm.slane %v1906, %v2248
      %v2294 = vsel %vm2250, %v2293, %v2292
      %v2295 = vperm.slane %v1909, %v2252
      %v2296 = vsel %vm2254, %v2295, %v2294
      %v2297 = vperm.slane %v1912, %v2256
      %v2298 = vsel %vm2258, %v2297, %v2296
      %v2299 = vperm.slane %v1915, %v2260
      %v2300 = vsel %vm2262, %v2299, %v2298
      %v2301 = vperm.slane %v1918, %v2264
      %v2302 = vsel %vm2266, %v2301, %v2300
      %v2303 = vperm.slane %v1921, %v2268
      %v2304 = vsel %vm2270, %v2303, %v2302
      %v2305 = vperm.slane %v1924, %v2272
      %v2306 = vsel %vm2274, %v2305, %v2304
      %v2307 = vperm.slane %v1927, %v2214
      %v2308 = vperm.slane %v1930, %v2216
      %v2309 = vsel %vm2218, %v2308, %v2307
      %v2310 = vperm.slane %v1933, %v2220
      %v2311 = vsel %vm2222, %v2310, %v2309
      %v2312 = vperm.slane %v1936, %v2224
      %v2313 = vsel %vm2226, %v2312, %v2311
      %v2314 = vperm.slane %v1939, %v2228
      %v2315 = vsel %vm2230, %v2314, %v2313
      %v2316 = vperm.slane %v1942, %v2232
      %v2317 = vsel %vm2234, %v2316, %v2315
      %v2318 = vperm.slane %v1945, %v2236
      %v2319 = vsel %vm2238, %v2318, %v2317
      %v2320 = vperm.slane %v1948, %v2240
      %v2321 = vsel %vm2242, %v2320, %v2319
      %v2322 = vperm.slane %v1951, %v2244
      %v2323 = vsel %vm2246, %v2322, %v2321
      %v2324 = vperm.slane %v1954, %v2248
      %v2325 = vsel %vm2250, %v2324, %v2323
      %v2326 = vperm.slane %v1957, %v2252
      %v2327 = vsel %vm2254, %v2326, %v2325
      %v2328 = vperm.slane %v1960, %v2256
      %v2329 = vsel %vm2258, %v2328, %v2327
      %v2330 = vperm.slane %v1963, %v2260
      %v2331 = vsel %vm2262, %v2330, %v2329
      %v2332 = vperm.slane %v1966, %v2264
      %v2333 = vsel %vm2266, %v2332, %v2331
      %v2334 = vperm.slane %v1969, %v2268
      %v2335 = vsel %vm2270, %v2334, %v2333
      %v2336 = vperm.slane %v1972, %v2272
      %v2337 = vsel %vm2274, %v2336, %v2335
      %v2338 = vperm.slane %v1975, %v2214
      %v2339 = vperm.slane %v1978, %v2216
      %v2340 = vsel %vm2218, %v2339, %v2338
      %v2341 = vperm.slane %v1981, %v2220
      %v2342 = vsel %vm2222, %v2341, %v2340
      %v2343 = vperm.slane %v1984, %v2224
      %v2344 = vsel %vm2226, %v2343, %v2342
      %v2345 = vperm.slane %v1987, %v2228
      %v2346 = vsel %vm2230, %v2345, %v2344
      %v2347 = vperm.slane %v1990, %v2232
      %v2348 = vsel %vm2234, %v2347, %v2346
      %v2349 = vperm.slane %v1993, %v2236
      %v2350 = vsel %vm2238, %v2349, %v2348
      %v2351 = vperm.slane %v1996, %v2240
      %v2352 = vsel %vm2242, %v2351, %v2350
      %v2353 = vperm.slane %v1999, %v2244
      %v2354 = vsel %vm2246, %v2353, %v2352
      %v2355 = vperm.slane %v2002, %v2248
      %v2356 = vsel %vm2250, %v2355, %v2354
      %v2357 = vperm.slane %v2005, %v2252
      %v2358 = vsel %vm2254, %v2357, %v2356
      %v2359 = vperm.slane %v2008, %v2256
      %v2360 = vsel %vm2258, %v2359, %v2358
      %v2361 = vperm.slane %v2011, %v2260
      %v2362 = vsel %vm2262, %v2361, %v2360
      %v2363 = vperm.slane %v2014, %v2264
      %v2364 = vsel %vm2266, %v2363, %v2362
      %v2365 = vperm.slane %v2017, %v2268
      %v2366 = vsel %vm2270, %v2365, %v2364
      %v2367 = vperm.slane %v2020, %v2272
      %v2368 = vsel %vm2274, %v2367, %v2366
      %v2369 = vperm.slane %v2023, %v2214
      %v2370 = vperm.slane %v2026, %v2216
      %v2371 = vsel %vm2218, %v2370, %v2369
      %v2372 = vperm.slane %v2029, %v2220
      %v2373 = vsel %vm2222, %v2372, %v2371
      %v2374 = vperm.slane %v2032, %v2224
      %v2375 = vsel %vm2226, %v2374, %v2373
      %v2376 = vperm.slane %v2035, %v2228
      %v2377 = vsel %vm2230, %v2376, %v2375
      %v2378 = vperm.slane %v2038, %v2232
      %v2379 = vsel %vm2234, %v2378, %v2377
      %v2380 = vperm.slane %v2041, %v2236
      %v2381 = vsel %vm2238, %v2380, %v2379
      %v2382 = vperm.slane %v2044, %v2240
      %v2383 = vsel %vm2242, %v2382, %v2381
      %v2384 = vperm.slane %v2047, %v2244
      %v2385 = vsel %vm2246, %v2384, %v2383
      %v2386 = vperm.slane %v2050, %v2248
      %v2387 = vsel %vm2250, %v2386, %v2385
      %v2388 = vperm.slane %v2053, %v2252
      %v2389 = vsel %vm2254, %v2388, %v2387
      %v2390 = vperm.slane %v2056, %v2256
      %v2391 = vsel %vm2258, %v2390, %v2389
      %v2392 = vperm.slane %v2059, %v2260
      %v2393 = vsel %vm2262, %v2392, %v2391
      %v2394 = vperm.slane %v2062, %v2264
      %v2395 = vsel %vm2266, %v2394, %v2393
      %v2396 = vperm.slane %v2065, %v2268
      %v2397 = vsel %vm2270, %v2396, %v2395
      %v2398 = vperm.slane %v2068, %v2272
      %v2399 = vsel %vm2274, %v2398, %v2397
      %v2400 = vperm.slane %v2071, %v2214
      %v2401 = vperm.slane %v2074, %v2216
      %v2402 = vsel %vm2218, %v2401, %v2400
      %v2403 = vperm.slane %v2077, %v2220
      %v2404 = vsel %vm2222, %v2403, %v2402
      %v2405 = vperm.slane %v2080, %v2224
      %v2406 = vsel %vm2226, %v2405, %v2404
      %v2407 = vperm.slane %v2083, %v2228
      %v2408 = vsel %vm2230, %v2407, %v2406
      %v2409 = vperm.slane %v2086, %v2232
      %v2410 = vsel %vm2234, %v2409, %v2408
      %v2411 = vperm.slane %v2089, %v2236
      %v2412 = vsel %vm2238, %v2411, %v2410
      %v2413 = vperm.slane %v2092, %v2240
      %v2414 = vsel %vm2242, %v2413, %v2412
      %v2415 = vperm.slane %v2095, %v2244
      %v2416 = vsel %vm2246, %v2415, %v2414
      %v2417 = vperm.slane %v2098, %v2248
      %v2418 = vsel %vm2250, %v2417, %v2416
      %v2419 = vperm.slane %v2101, %v2252
      %v2420 = vsel %vm2254, %v2419, %v2418
      %v2421 = vperm.slane %v2104, %v2256
      %v2422 = vsel %vm2258, %v2421, %v2420
      %v2423 = vperm.slane %v2107, %v2260
      %v2424 = vsel %vm2262, %v2423, %v2422
      %v2425 = vperm.slane %v2110, %v2264
      %v2426 = vsel %vm2266, %v2425, %v2424
      %v2427 = vperm.slane %v2113, %v2268
      %v2428 = vsel %vm2270, %v2427, %v2426
      %v2429 = vperm.slane %v2116, %v2272
      %v2430 = vsel %vm2274, %v2429, %v2428
      %v2431 = vperm.slane %v2119, %v2214
      %v2432 = vperm.slane %v2122, %v2216
      %v2433 = vsel %vm2218, %v2432, %v2431
      %v2434 = vperm.slane %v2125, %v2220
      %v2435 = vsel %vm2222, %v2434, %v2433
      %v2436 = vperm.slane %v2128, %v2224
      %v2437 = vsel %vm2226, %v2436, %v2435
      %v2438 = vperm.slane %v2131, %v2228
      %v2439 = vsel %vm2230, %v2438, %v2437
      %v2440 = vperm.slane %v2134, %v2232
      %v2441 = vsel %vm2234, %v2440, %v2439
      %v2442 = vperm.slane %v2137, %v2236
      %v2443 = vsel %vm2238, %v2442, %v2441
      %v2444 = vperm.slane %v2140, %v2240
      %v2445 = vsel %vm2242, %v2444, %v2443
      %v2446 = vperm.slane %v2143, %v2244
      %v2447 = vsel %vm2246, %v2446, %v2445
      %v2448 = vperm.slane %v2146, %v2248
      %v2449 = vsel %vm2250, %v2448, %v2447
      %v2450 = vperm.slane %v2149, %v2252
      %v2451 = vsel %vm2254, %v2450, %v2449
      %v2452 = vperm.slane %v2152, %v2256
      %v2453 = vsel %vm2258, %v2452, %v2451
      %v2454 = vperm.slane %v2155, %v2260
      %v2455 = vsel %vm2262, %v2454, %v2453
      %v2456 = vperm.slane %v2158, %v2264
      %v2457 = vsel %vm2266, %v2456, %v2455
      %v2458 = vperm.slane %v2161, %v2268
      %v2459 = vsel %vm2270, %v2458, %v2457
      %v2460 = vperm.slane %v2164, %v2272
      %v2461 = vsel %vm2274, %v2460, %v2459
      %v2462 = vperm.slane %v2167, %v2214
      %v2463 = vperm.slane %v2170, %v2216
      %v2464 = vsel %vm2218, %v2463, %v2462
      %v2465 = vperm.slane %v2173, %v2220
      %v2466 = vsel %vm2222, %v2465, %v2464
      %v2467 = vperm.slane %v2176, %v2224
      %v2468 = vsel %vm2226, %v2467, %v2466
      %v2469 = vperm.slane %v2179, %v2228
      %v2470 = vsel %vm2230, %v2469, %v2468
      %v2471 = vperm.slane %v2182, %v2232
      %v2472 = vsel %vm2234, %v2471, %v2470
      %v2473 = vperm.slane %v2185, %v2236
      %v2474 = vsel %vm2238, %v2473, %v2472
      %v2475 = vperm.slane %v2188, %v2240
      %v2476 = vsel %vm2242, %v2475, %v2474
      %v2477 = vperm.slane %v2191, %v2244
      %v2478 = vsel %vm2246, %v2477, %v2476
      %v2479 = vperm.slane %v2194, %v2248
      %v2480 = vsel %vm2250, %v2479, %v2478
      %v2481 = vperm.slane %v2197, %v2252
      %v2482 = vsel %vm2254, %v2481, %v2480
      %v2483 = vperm.slane %v2200, %v2256
      %v2484 = vsel %vm2258, %v2483, %v2482
      %v2485 = vperm.slane %v2203, %v2260
      %v2486 = vsel %vm2262, %v2485, %v2484
      %v2487 = vperm.slane %v2206, %v2264
      %v2488 = vsel %vm2266, %v2487, %v2486
      %v2489 = vperm.slane %v2209, %v2268
      %v2490 = vsel %vm2270, %v2489, %v2488
      %v2491 = vperm.slane %v2212, %v2272
      %v2492 = vsel %vm2274, %v2491, %v2490
      %vm2493 = vcmask 1041409
      %v2494 = vsel %vm2493, %v2306, %v2275
      %vm2495 = vcmask 1042434
      %v2496 = vsel %vm2495, %v2337, %v2494
      %vm2497 = vcmask 1043459
      %v2498 = vsel %vm2497, %v2368, %v2496
      %vm2499 = vcmask 1044484
      %v2500 = vsel %vm2499, %v2399, %v2498
      %vm2501 = vcmask 1045509
      %v2502 = vsel %vm2501, %v2430, %v2500
      %vm2503 = vcmask 1046534
      %v2504 = vsel %vm2503, %v2461, %v2502
      %vm2505 = vcmask 1047559
      %v2506 = vsel %vm2505, %v2492, %v2504
      %vm2508 = vcmp.lt.f32.partialorder %v1700, %v2506
      %v2509 = vsel %vm2508, 1, 0
      %v2510 = vcvt.s32.f32 %v2509
      %v2511 = vsub.f32 1.0, %v1696
      %v2512 = vmul.f32 %v2510, %v2511
      %s2513 = sld [smem:[#allocation2 + %s1691]]
      %vm2514 = vcmp.gt.f32.partialorder %v2512, 0.5
      %v2515 = vstv %s2513
      %v2516 = vsel %vm2514, %v2515, %v1697
      %v2517 = vmax.f32 %v1696, %v2510
    $region38: #{tpu_custom_call.1} parent=1 // loop_footer
      %s1695 = sadd.s32 1, %s1691
    $region39: #{tpu_custom_call.1} parent=1 // loop_footer_branch
      %1690 = sbr.rel target = $region35
    $region40: #{tpu_custom_call.1} parent=1 // loop_exit
      _
    %v2518 = vmul.f32 %v1697, %v87
    %v2519 = vmul.f32 %v2518, %v93
    %2520 = vadd.xlane.f32.xlu0 %v2519
    %v2521 = vpop.xlane.xlu0 %2520
    %v2522 = vrot.slane %v2521, 4
    %v2523 = vadd.f32 %v2521, %v2522
    %v2524 = vrot.slane %v2523, 2
    %v2525 = vadd.f32 %v2523, %v2524
    %v2526 = vrot.slane %v2525, 1
    %v2527 = vadd.f32 %v2525, %v2526
    %s2528 = vtos %v2527
    %v2529 = vstv %s2528
    %vm2530 = vcmask 0
    %2531 = vst.msk [vmem:[#allocation10] sm:$0x1] %vm2530, %v2529
    // Predicated region
    $region41: #{tpu_custom_call.1} parent=1 // pred_check
      _
    $region42: #{tpu_custom_call.1} parent=1 // pred_check_branch
      %2533 = sbr.rel (0) target = $region44
    $region43: #{tpu_custom_call.1} parent=1 // pred_region
      %2535 = vsyncadd [#allocation4], 0
      %s2537 = sshll.u32 [#allocation10], 4
      %s2538 = int_to_ptr.vmem [resolvable:$true] %s2537
      %s2539 = sshll.u32 %s4, 4
      %s2540 = int_to_ptr.hbm [resolvable:$true] %s2539
      %2542 = dma.vmem_to_hbm [thread:$0]  %s2538, 16, %s2540, [#allocation4]
    $region44: #{tpu_custom_call.1} parent=1 // pred_fallthru
      _
    // Predicated region
    $region45: #{tpu_custom_call.1} parent=1 // pred_check
      _
    $region46: #{tpu_custom_call.1} parent=1 // pred_check_branch
      %2544 = sbr.rel (0) target = $region48
    $region47: #{tpu_custom_call.1} parent=1 // pred_region
      %2546 = dma.done [#allocation4], 16
    $region48: #{tpu_custom_call.1} parent=1 // pred_fallthru
      _
    %2547 = vsyncpa [#allocation3], 1
    %2548 = vsyncpa [#allocation8], 1
    %2549 = vsyncpa [#allocation4], 1
    %2550 = vsyncpa [#allocation5], 1

</llo_original>
